<compile_context>
chip_gen: v7x
topology: tpu7x:2x2x1
jax: 0.10.0
libtpu: 0.0.40
codegen_flags: <defaults>
</compile_context>

<pallas_src>
import functools

import numpy as np

import jax
import jax.numpy as jnp
from jax import lax
from jax.experimental import pallas as pl
from jax.experimental.pallas import tpu as pltpu

# ---- sizes (small, consistent with forward_vmap: z (B, nz), x (B, nx)) ----
NZ, NX, NH, NY, NHH = 8, 16, 32, 4, 32
SP_SHAPES = [(NH, NX), (NH,), (NY, NH), (NY,)]          # synthnet param shapes
SP_SIZES = [NH * NX, NH, NY * NH, NY]
SP_OFFSETS = [0]
for _s in SP_SIZES:
    SP_OFFSETS.append(SP_OFFSETS[-1] + _s)
P_TOTAL = SP_OFFSETS[-1]                                # 676

LANE = 128
NY_PAD = LANE                                           # lane-dense output width
N_PW1 = NH * NX                                         # 512
N_PW2 = NY * NH                                         # 128
N_PB1 = LANE                                            # b1 replicated NY times
N_PB2 = LANE                                            # b2 zero-padded
P_PACK = N_PW1 + N_PW2 + N_PB1 + N_PB2                  # 896


def _round_up(n, m):
    return ((n + m - 1) // m) * m


def _linear_t(x, w):
    """x @ w.T with f32 accumulation on the MXU (PyTorch nn.Linear convention)."""
    return lax.dot_general(x, w, (((1,), (1,)), ((), ())),
                           preferred_element_type=jnp.float32)


# ------------------------ constant 0/1 layout matrices -------------------------
def _t1_const():
    """T1: (NX, NH*NX), T1[i, j*NX+i'] = 1 iff i == i'.  x @ T1 replicates x NH
    times along lanes (matches the row-major layout of the flat W1 segment)."""
    i = np.arange(NX)[:, None]
    k = np.arange(NH * NX)[None, :]
    return jnp.asarray((k % NX == i).astype(np.float32))


def _s1t2_const():
    """S1T2: (NH*NX, NY*NH), = selector(sum over i per group j) fused with the
    layer-2 replication: S1T2[j*NX+i, o*NH+j'] = 1 iff j == j'.  Output of
    (pW1*xt) @ S1T2 is the synthnet hidden pre-activation already replicated NY
    times along lanes (lane-dense 128-wide tile)."""
    r = np.arange(NH * NX) // NX
    c = np.arange(NY * NH) % NH
    return jnp.asarray((r[:, None] == c[None, :]).astype(np.float32))


def _s2_pad_const():
    """S2p: (NY*NH, NY_PAD), S2p[o*NH+j, o'] = 1 iff o == o' (columns >= NY are
    all zero -> lane-dense, zero-padded output block)."""
    r = np.arange(NY * NH) // NH
    c = np.arange(NY_PAD)
    return jnp.asarray((r[:, None] == c[None, :]).astype(np.float32))


# ----------------------- fused hypnet + synthnet kernel ------------------------
def fused_kernel(z_ref, x_ref, wh1_ref, bh1_ref, wpk_ref, bpk_ref,
                 t1_ref, s1t2_ref, s2p_ref, o_ref):
    z = z_ref[...]                                            # (BT, NZ)
    x = x_ref[...]                                            # (BT, NX)

    # shared hypnet layer 1: hh = tanh(z @ Wh1.T + bh1)
    hh = jnp.tanh(_linear_t(z, wh1_ref[...]) + bh1_ref[...])  # (BT, NHH)

    # hypnet layer 2: ONE packed matmul producing all per-example synthnet
    # parameters (never touch HBM); 128-aligned static lane slices.
    pall = _linear_t(hh, wpk_ref[...]) + bpk_ref[...]         # (BT, 896)
    pW1 = pall[:, :N_PW1]                                     # (BT, 512)
    pW2 = pall[:, N_PW1:N_PW1 + N_PW2]                        # (BT, 128)
    pb1r = pall[:, N_PW1 + N_PW2:N_PW1 + N_PW2 + N_PB1]       # (BT, 128) b1 x4
    pb2p = pall[:, N_PW1 + N_PW2 + N_PB1:]                    # (BT, 128) b2 pad

    # synthnet layer 1 (replicated layout): hid_rep[b, o*NH+j] = tanh(
    #   sum_i W1[b,j,i]*x[b,i] + b1[b,j]) for every o — tanh runs on a full
    # 128-lane tile and the result is already in layer-2 replication layout.
    xt = jnp.dot(x, t1_ref[...], preferred_element_type=jnp.float32)   # (BT, 512)
    hid_rep = jnp.tanh(
        jnp.dot(pW1 * xt, s1t2_ref[...], preferred_element_type=jnp.float32)
        + pb1r)                                                         # (BT, 128)

    # synthnet layer 2: out[b, o] = sum_j W2[b,o,j]*hid[b,j] + b2[b,o],
    # written as a lane-dense (BT, 128) block (cols >= NY are zero).
    o_ref[...] = (jnp.dot(pW2 * hid_rep, s2p_ref[...],
                          preferred_element_type=jnp.float32) + pb2p)   # (BT, 128)


# ---------------------------- HyperNetwork forwards ----------------------------
@functools.partial(jax.jit, static_argnames=("max_bt",))
def _forward_vmap_jit(hyp_params, z, x, max_bt):
    wh1, bh1, wh2, bh2 = hyp_params
    B = z.shape[0]

    # batch tile: multiple of 8 sublanes, at least 2 grid steps for throughput
    # batches (2nd TensorCore on v7x), capped at max_bt.
    half = -(-B // 2)
    BT = max(8, min(max_bt, _round_up(half, 8)))
    Bp = _round_up(B, BT)
    if Bp != B:
        z = jnp.pad(z, ((0, Bp - B), (0, 0)))
        x = jnp.pad(x, ((0, Bp - B), (0, 0)))
    # NOTE: padded batch rows hold garbage (tanh of biases); they are discarded
    # by the [:B] slice below — keep that invariant if aliasing is ever added.

    # one-time (per trace) split + repack of the hypnet output layer:
    #   [ wW1 (512) | wW2 (128) | wb1 tiled x4 (128) | wb2 zero-padded (128) ]
    o = SP_OFFSETS
    wW1, bW1 = wh2[o[0]:o[1]], bh2[o[0]:o[1]]
    wb1, bb1 = wh2[o[1]:o[2]], bh2[o[1]:o[2]]
    wW2, bW2 = wh2[o[2]:o[3]], bh2[o[2]:o[3]]
    wb2, bb2 = wh2[o[3]:o[4]], bh2[o[3]:o[4]]
    w_packed = jnp.concatenate(
        [wW1, wW2,
         jnp.tile(wb1, (NY, 1)),
         jnp.concatenate([wb2, jnp.zeros((N_PB2 - NY, NHH), jnp.float32)], 0)], 0)
    b_packed = jnp.concatenate(
        [bW1, bW2,
         jnp.tile(bb1, (NY,)),
         jnp.concatenate([bb2, jnp.zeros((N_PB2 - NY,), jnp.float32)], 0)],
        0).reshape(1, -1)                                     # (1, 896)

    t1, s1t2, s2p = _t1_const(), _s1t2_const(), _s2_pad_const()

    def const_spec(shape):
        return pl.BlockSpec(shape, lambda t: (0, 0))

    def batch_spec(n):
        return pl.BlockSpec((BT, n), lambda t: (t, 0))

    # advisory cost estimate (per padded example)
    flops_per = 2 * (NZ * NHH + NHH * P_PACK + NX * N_PW1
                     + N_PW1 * (NY * NH) + (NY * NH) * NY_PAD) + N_PW1 + NY * NH
    const_elems = (NHH * NZ + NHH + P_PACK * NHH + P_PACK
                   + NX * N_PW1 + N_PW1 * (NY * NH) + (NY * NH) * NY_PAD)
    cost = pl.CostEstimate(
        flops=Bp * flops_per,
        transcendentals=Bp * (NHH + NY * NH),
        bytes_accessed=Bp * (NZ + NX + NY_PAD) * 4 + const_elems * 4,
    )

    # VMEM budget: ~8.7 KiB of live intermediates per batch row + constants,
    # with headroom; floor at the v5e scoped default, capped well under v7x's
    # 64 MiB physical.
    vmem_bytes = int(min(48 << 20, max(16 << 20, (2 << 20) + 28 * 1024 * BT)))

    out = pl.pallas_call(
        fused_kernel,
        out_shape=jax.ShapeDtypeStruct((Bp, NY_PAD), jnp.float32),
        grid=(Bp // BT,),
        in_specs=[
            batch_spec(NZ), batch_spec(NX),
            const_spec((NHH, NZ)), const_spec((1, NHH)),
            const_spec((P_PACK, NHH)), const_spec((1, P_PACK)),
            const_spec((NX, N_PW1)), const_spec((N_PW1, NY * NH)),
            const_spec((NY * NH, NY_PAD)),
        ],
        out_specs=batch_spec(NY_PAD),
        compiler_params=pltpu.CompilerParams(
            dimension_semantics=("parallel",),
            vmem_limit_bytes=vmem_bytes),
        cost_estimate=cost,
    )(z, x, wh1, bh1.reshape(1, -1), w_packed, b_packed, t1, s1t2, s2p)

    return out[:B, :NY]


def hypernetwork_forward_vmap(hyp_params, z, x, *, max_bt=512):
    """z: (B, nz), x: (B, nx) -> (B, ny). Mirrors HyperNetwork.forward_vmap."""
    return _forward_vmap_jit(hyp_params, z, x, max_bt=max_bt)


def hypernetwork_forward(hyp_params, z, x):
    """z: (nz,), x: (nx,) -> (ny,). Mirrors HyperNetwork.forward."""
    return hypernetwork_forward_vmap(hyp_params, z[None, :], x[None, :])[0]


# TODO(synk): functorch.make_functional / vmap plumbing has no Pallas equivalent;
# it is trace-time glue and is reproduced by the wrapper-side weight packing.


# ------------------------------ pure-JAX reference -----------------------------
def reference_forward_vmap(hyp_params, z, x):
    wh1, bh1, wh2, bh2 = hyp_params
    h = jnp.tanh(z @ wh1.T + bh1)
    params = h @ wh2.T + bh2
    B = z.shape[0]
    j = SP_OFFSETS
    w1 = params[:, j[0]:j[1]].reshape(B, NH, NX)
    b1 = params[:, j[1]:j[2]].reshape(B, NH)
    w2 = params[:, j[2]:j[3]].reshape(B, NY, NH)
    b2 = params[:, j[3]:j[4]].reshape(B, NY)
    hid = jnp.tanh(jnp.einsum('bji,bi->bj', w1, x) + b1)
    return jnp.einsum('boj,bj->bo', w2, hid) + b2


if __name__ == "__main__":
    key = jax.random.PRNGKey(0)
    k0, k1, k2, k3, k4, k5 = jax.random.split(key, 6)

    # deterministic hypnet weights (PyTorch nn.Linear-style uniform init)
    kh1 = 1.0 / (NZ ** 0.5)
    wh1 = jax.random.uniform(k0, (NHH, NZ), jnp.float32, -kh1, kh1)
    bh1 = jax.random.uniform(k1, (NHH,), jnp.float32, -kh1, kh1)
    kh2 = 1.0 / (NHH ** 0.5)
    wh2 = jax.random.uniform(k2, (P_TOTAL, NHH), jnp.float32, -kh2, kh2)
    bh2 = jax.random.uniform(k3, (P_TOTAL,), jnp.float32, -kh2, kh2)
    hyp_params = (wh1, bh1, wh2, bh2)

    # small batch (matches forward_vmap semantics)
    B = 2
    z = jax.random.normal(k4, (B, NZ), jnp.float32)
    x = jax.random.normal(k5, (B, NX), jnp.float32)

    out = jax.block_until_ready(hypernetwork_forward_vmap(hyp_params, z, x))
    ref = reference_forward_vmap(hyp_params, z, x)
    assert out.shape == (B, NY), out.shape
    if not bool(jnp.allclose(out, ref, atol=1e-4, rtol=1e-4)):
        raise SystemExit(f"mismatch (B=2): max abs err {float(jnp.max(jnp.abs(out - ref)))}")

    # multi-tile / padded path: B not a multiple of the tile, small tile to force grid>1
    kB1, kB2 = jax.random.split(k5)
    B2 = 300
    z2 = jax.random.normal(kB1, (B2, NZ), jnp.float32)
    x2 = jax.random.normal(kB2, (B2, NX), jnp.float32)
    out2 = jax.block_until_ready(hypernetwork_forward_vmap(hyp_params, z2, x2, max_bt=128))
    ref2 = reference_forward_vmap(hyp_params, z2, x2)
    if not bool(jnp.allclose(out2, ref2, atol=1e-4, rtol=1e-4)):
        raise SystemExit(f"mismatch (B=300): max abs err {float(jnp.max(jnp.abs(out2 - ref2)))}")

    # default-tile path exercising the grid>=2 split for throughput batches
    out3 = jax.block_until_ready(hypernetwork_forward_vmap(hyp_params, z2, x2))
    if not bool(jnp.allclose(out3, ref2, atol=1e-4, rtol=1e-4)):
        raise SystemExit(f"mismatch (B=300, default tile): "
                         f"max abs err {float(jnp.max(jnp.abs(out3 - ref2)))}")

    # single-example forward path (same fused kernel, batch of 1)
    out1 = jax.block_until_ready(hypernetwork_forward(hyp_params, z[0], x[0]))
    assert out1.shape == (NY,)

    print("KERNEL_OK")
</pallas_src>

<mosaic_0001>
module attributes {stable_mosaic.version = 11 : i64} {
  func.func @fused_kernel(%arg0: i32, %arg1: memref<8x8xf32, #tpu.memory_space<vmem>>, %arg2: memref<8x16xf32, #tpu.memory_space<vmem>>, %arg3: memref<32x8xf32, #tpu.memory_space<vmem>>, %arg4: memref<1x32xf32, #tpu.memory_space<vmem>>, %arg5: memref<896x32xf32, #tpu.memory_space<vmem>>, %arg6: memref<1x896xf32, #tpu.memory_space<vmem>>, %arg7: memref<16x512xf32, #tpu.memory_space<vmem>>, %arg8: memref<512x128xf32, #tpu.memory_space<vmem>>, %arg9: memref<128x128xf32, #tpu.memory_space<vmem>>, %arg10: memref<8x128xf32, #tpu.memory_space<vmem>>) attributes {dimension_semantics = [#tpu.dimension_semantics<parallel>], iteration_bounds = array<i64: 1>, scalar_prefetch = 0 : i64, scratch_operands = 0 : i64, tpu.core_type = #tpu.core_type<tc>, window_params = [{transform_indices = @transform_0, window_bounds = array<i64: 8, 8>}, {transform_indices = @transform_1, window_bounds = array<i64: 8, 16>}, {pipeline_mode = #tpu.pipeline_mode<synchronous>, transform_indices = @transform_2, window_bounds = array<i64: 32, 8>}, {pipeline_mode = #tpu.pipeline_mode<synchronous>, transform_indices = @transform_3, window_bounds = array<i64: 1, 32>}, {pipeline_mode = #tpu.pipeline_mode<synchronous>, transform_indices = @transform_4, window_bounds = array<i64: 896, 32>}, {pipeline_mode = #tpu.pipeline_mode<synchronous>, transform_indices = @transform_5, window_bounds = array<i64: 1, 896>}, {pipeline_mode = #tpu.pipeline_mode<synchronous>, transform_indices = @transform_6, window_bounds = array<i64: 16, 512>}, {pipeline_mode = #tpu.pipeline_mode<synchronous>, transform_indices = @transform_7, window_bounds = array<i64: 512, 128>}, {pipeline_mode = #tpu.pipeline_mode<synchronous>, transform_indices = @transform_8, window_bounds = array<i64: 128, 128>}, {transform_indices = @transform_9, window_bounds = array<i64: 8, 128>}]} {
    %c0 = arith.constant 0 : index
    %c0_0 = arith.constant 0 : index
    %0 = vector.load %arg1[%c0, %c0_0] : memref<8x8xf32, #tpu.memory_space<vmem>>, vector<8x8xf32>
    %c0_1 = arith.constant 0 : index
    %c0_2 = arith.constant 0 : index
    %1 = vector.load %arg2[%c0_1, %c0_2] : memref<8x16xf32, #tpu.memory_space<vmem>>, vector<8x16xf32>
    %c0_3 = arith.constant 0 : index
    %c0_4 = arith.constant 0 : index
    %2 = vector.load %arg3[%c0_3, %c0_4] : memref<32x8xf32, #tpu.memory_space<vmem>>, vector<32x8xf32>
    %cst = arith.constant dense<0.000000e+00> : vector<8x32xf32>
    %3 = tpu.matmul %0, %2, %cst {dimension_numbers = #tpu.dot_dimension_numbers<[1], [1], [0], [0], [0, 0, 1, 0], [], []>} : vector<8x8xf32>, vector<32x8xf32>, vector<8x32xf32> -> vector<8x32xf32>
    %c0_5 = arith.constant 0 : index
    %c0_6 = arith.constant 0 : index
    %4 = vector.load %arg4[%c0_5, %c0_6] : memref<1x32xf32, #tpu.memory_space<vmem>>, vector<1x32xf32>
    %5 = vector.broadcast %4 : vector<1x32xf32> to vector<8x32xf32>
    %6 = arith.addf %3, %5 : vector<8x32xf32>
    %7 = math.tanh %6 : vector<8x32xf32>
    %c0_7 = arith.constant 0 : index
    %c0_8 = arith.constant 0 : index
    %8 = vector.load %arg5[%c0_7, %c0_8] : memref<896x32xf32, #tpu.memory_space<vmem>>, vector<896x32xf32>
    %cst_9 = arith.constant dense<0.000000e+00> : vector<8x896xf32>
    %9 = tpu.matmul %7, %8, %cst_9 {dimension_numbers = #tpu.dot_dimension_numbers<[1], [1], [0], [0], [0, 0, 1, 0], [], []>} : vector<8x32xf32>, vector<896x32xf32>, vector<8x896xf32> -> vector<8x896xf32>
    %c0_10 = arith.constant 0 : index
    %c0_11 = arith.constant 0 : index
    %10 = vector.load %arg6[%c0_10, %c0_11] : memref<1x896xf32, #tpu.memory_space<vmem>>, vector<1x896xf32>
    %11 = vector.broadcast %10 : vector<1x896xf32> to vector<8x896xf32>
    %12 = arith.addf %9, %11 : vector<8x896xf32>
    %13 = vector.extract_strided_slice %12 {offsets = [0, 0], sizes = [8, 512], strides = [1, 1]} : vector<8x896xf32> to vector<8x512xf32>
    %14 = vector.extract_strided_slice %12 {offsets = [0, 512], sizes = [8, 128], strides = [1, 1]} : vector<8x896xf32> to vector<8x128xf32>
    %15 = vector.extract_strided_slice %12 {offsets = [0, 640], sizes = [8, 128], strides = [1, 1]} : vector<8x896xf32> to vector<8x128xf32>
    %16 = vector.extract_strided_slice %12 {offsets = [0, 768], sizes = [8, 128], strides = [1, 1]} : vector<8x896xf32> to vector<8x128xf32>
    %c0_12 = arith.constant 0 : index
    %c0_13 = arith.constant 0 : index
    %17 = vector.load %arg7[%c0_12, %c0_13] : memref<16x512xf32, #tpu.memory_space<vmem>>, vector<16x512xf32>
    %cst_14 = arith.constant dense<0.000000e+00> : vector<8x512xf32>
    %18 = tpu.matmul %1, %17, %cst_14 {dimension_numbers = #tpu.dot_dimension_numbers<[1], [0], [0], [1], [0, 0, 1, 1], [], []>} : vector<8x16xf32>, vector<16x512xf32>, vector<8x512xf32> -> vector<8x512xf32>
    %19 = arith.mulf %13, %18 : vector<8x512xf32>
    %c0_15 = arith.constant 0 : index
    %c0_16 = arith.constant 0 : index
    %20 = vector.load %arg8[%c0_15, %c0_16] : memref<512x128xf32, #tpu.memory_space<vmem>>, vector<512x128xf32>
    %cst_17 = arith.constant dense<0.000000e+00> : vector<8x128xf32>
    %21 = tpu.matmul %19, %20, %cst_17 {dimension_numbers = #tpu.dot_dimension_numbers<[1], [0], [0], [1], [0, 0, 1, 1], [], []>} : vector<8x512xf32>, vector<512x128xf32>, vector<8x128xf32> -> vector<8x128xf32>
    %22 = arith.addf %21, %15 : vector<8x128xf32>
    %23 = math.tanh %22 : vector<8x128xf32>
    %24 = arith.mulf %14, %23 : vector<8x128xf32>
    %c0_18 = arith.constant 0 : index
    %c0_19 = arith.constant 0 : index
    %25 = vector.load %arg9[%c0_18, %c0_19] : memref<128x128xf32, #tpu.memory_space<vmem>>, vector<128x128xf32>
    %cst_20 = arith.constant dense<0.000000e+00> : vector<8x128xf32>
    %26 = tpu.matmul %24, %25, %cst_20 {dimension_numbers = #tpu.dot_dimension_numbers<[1], [0], [0], [1], [0, 0, 1, 1], [], []>} : vector<8x128xf32>, vector<128x128xf32>, vector<8x128xf32> -> vector<8x128xf32>
    %27 = arith.addf %26, %16 : vector<8x128xf32>
    %c0_21 = arith.constant 0 : index
    %c0_22 = arith.constant 0 : index
    %28 = vector.load %arg10[%c0_21, %c0_22] : memref<8x128xf32, #tpu.memory_space<vmem>>, vector<8x128xf32>
    tpu.vector_store %arg10[%c0_21, %c0_22], %27 {strides = array<i32>} : memref<8x128xf32, #tpu.memory_space<vmem>>, vector<8x128xf32>,
    return
  }
  func.func @transform_0(%arg0: i32) -> (i32, i32) {
    %c0_i32 = arith.constant 0 : i32
    %c0_i32_0 = arith.constant 0 : i32
    return %arg0, %c0_i32 : i32, i32
  }
  func.func @transform_1(%arg0: i32) -> (i32, i32) {
    %c0_i32 = arith.constant 0 : i32
    %c0_i32_0 = arith.constant 0 : i32
    return %arg0, %c0_i32 : i32, i32
  }
  func.func @transform_2(%arg0: i32) -> (i32, i32) {
    %c0_i32 = arith.constant 0 : i32
    %c0_i32_0 = arith.constant 0 : i32
    %c0_i32_1 = arith.constant 0 : i32
    return %c0_i32, %c0_i32_0 : i32, i32
  }
  func.func @transform_3(%arg0: i32) -> (i32, i32) {
    %c0_i32 = arith.constant 0 : i32
    %c0_i32_0 = arith.constant 0 : i32
    %c0_i32_1 = arith.constant 0 : i32
    return %c0_i32, %c0_i32_0 : i32, i32
  }
  func.func @transform_4(%arg0: i32) -> (i32, i32) {
    %c0_i32 = arith.constant 0 : i32
    %c0_i32_0 = arith.constant 0 : i32
    %c0_i32_1 = arith.constant 0 : i32
    return %c0_i32, %c0_i32_0 : i32, i32
  }
  func.func @transform_5(%arg0: i32) -> (i32, i32) {
    %c0_i32 = arith.constant 0 : i32
    %c0_i32_0 = arith.constant 0 : i32
    %c0_i32_1 = arith.constant 0 : i32
    return %c0_i32, %c0_i32_0 : i32, i32
  }
  func.func @transform_6(%arg0: i32) -> (i32, i32) {
    %c0_i32 = arith.constant 0 : i32
    %c0_i32_0 = arith.constant 0 : i32
    %c0_i32_1 = arith.constant 0 : i32
    return %c0_i32, %c0_i32_0 : i32, i32
  }
  func.func @transform_7(%arg0: i32) -> (i32, i32) {
    %c0_i32 = arith.constant 0 : i32
    %c0_i32_0 = arith.constant 0 : i32
    %c0_i32_1 = arith.constant 0 : i32
    return %c0_i32, %c0_i32_0 : i32, i32
  }
  func.func @transform_8(%arg0: i32) -> (i32, i32) {
    %c0_i32 = arith.constant 0 : i32
    %c0_i32_0 = arith.constant 0 : i32
    %c0_i32_1 = arith.constant 0 : i32
    return %c0_i32, %c0_i32_0 : i32, i32
  }
  func.func @transform_9(%arg0: i32) -> (i32, i32) {
    %c0_i32 = arith.constant 0 : i32
    %c0_i32_0 = arith.constant 0 : i32
    return %arg0, %c0_i32 : i32, i32
  }
}

</mosaic_0001>

<llo_original>
// kernel: tile.14
$region0: #{tile.14}
  %s0 = inlined_call_operand.vmem [shape: f32[4,32,32], index: 0, kind: input, shape index: {}]
  %s1 = inlined_call_operand.vmem [shape: f32[128,32], index: 1, kind: output, shape index: {}]
  $region1: #{tile.14} parent=0
    #allocation0 [shape = 'u8[131072]{0}', space=vmem, size = 0x20000, scoped, tag = 'scoped mem for input reshape']
    %s3 = sshllo.u32 0, 4
    %s4 = smul.addr 4, 31
    %s5 = scalar_lea.vmem %s0, %s4
    %v6 = vld [vmem:[%s5] sm:%s3]
    %s7 = scalar_lea.vmem [#allocation0], 248
    %8 = vst [vmem:[%s7] sm:%s3] %v6
    %s9 = smul.addr 4, 30
    %s10 = scalar_lea.vmem %s0, %s9
    %v11 = vld [vmem:[%s10] sm:%s3]
    %s12 = scalar_lea.vmem [#allocation0], 240
    %13 = vst [vmem:[%s12] sm:%s3] %v11
    %s14 = smul.addr 4, 29
    %s15 = scalar_lea.vmem %s0, %s14
    %v16 = vld [vmem:[%s15] sm:%s3]
    %s17 = scalar_lea.vmem [#allocation0], 232
    %18 = vst [vmem:[%s17] sm:%s3] %v16
    %s19 = smul.addr 4, 28
    %s20 = scalar_lea.vmem %s0, %s19
    %v21 = vld [vmem:[%s20] sm:%s3]
    %s22 = scalar_lea.vmem [#allocation0], 224
    %23 = vst [vmem:[%s22] sm:%s3] %v21
    %s24 = smul.addr 4, 27
    %s25 = scalar_lea.vmem %s0, %s24
    %v26 = vld [vmem:[%s25] sm:%s3]
    %s27 = scalar_lea.vmem [#allocation0], 216
    %28 = vst [vmem:[%s27] sm:%s3] %v26
    %s29 = smul.addr 4, 26
    %s30 = scalar_lea.vmem %s0, %s29
    %v31 = vld [vmem:[%s30] sm:%s3]
    %s32 = scalar_lea.vmem [#allocation0], 208
    %33 = vst [vmem:[%s32] sm:%s3] %v31
    %s34 = smul.addr 4, 25
    %s35 = scalar_lea.vmem %s0, %s34
    %v36 = vld [vmem:[%s35] sm:%s3]
    %s37 = scalar_lea.vmem [#allocation0], 200
    %38 = vst [vmem:[%s37] sm:%s3] %v36
    %s39 = smul.addr 4, 24
    %s40 = scalar_lea.vmem %s0, %s39
    %v41 = vld [vmem:[%s40] sm:%s3]
    %s42 = scalar_lea.vmem [#allocation0], 192
    %43 = vst [vmem:[%s42] sm:%s3] %v41
    %s44 = smul.addr 4, 23
    %s45 = scalar_lea.vmem %s0, %s44
    %v46 = vld [vmem:[%s45] sm:%s3]
    %s47 = scalar_lea.vmem [#allocation0], 184
    %48 = vst [vmem:[%s47] sm:%s3] %v46
    %s49 = smul.addr 4, 22
    %s50 = scalar_lea.vmem %s0, %s49
    %v51 = vld [vmem:[%s50] sm:%s3]
    %s52 = scalar_lea.vmem [#allocation0], 176
    %53 = vst [vmem:[%s52] sm:%s3] %v51
    %s54 = smul.addr 4, 21
    %s55 = scalar_lea.vmem %s0, %s54
    %v56 = vld [vmem:[%s55] sm:%s3]
    %s57 = scalar_lea.vmem [#allocation0], 168
    %58 = vst [vmem:[%s57] sm:%s3] %v56
    %s59 = smul.addr 4, 20
    %s60 = scalar_lea.vmem %s0, %s59
    %v61 = vld [vmem:[%s60] sm:%s3]
    %s62 = scalar_lea.vmem [#allocation0], 160
    %63 = vst [vmem:[%s62] sm:%s3] %v61
    %s64 = smul.addr 4, 19
    %s65 = scalar_lea.vmem %s0, %s64
    %v66 = vld [vmem:[%s65] sm:%s3]
    %s67 = scalar_lea.vmem [#allocation0], 152
    %68 = vst [vmem:[%s67] sm:%s3] %v66
    %s69 = smul.addr 4, 18
    %s70 = scalar_lea.vmem %s0, %s69
    %v71 = vld [vmem:[%s70] sm:%s3]
    %s72 = scalar_lea.vmem [#allocation0], 144
    %73 = vst [vmem:[%s72] sm:%s3] %v71
    %s74 = smul.addr 4, 17
    %s75 = scalar_lea.vmem %s0, %s74
    %v76 = vld [vmem:[%s75] sm:%s3]
    %s77 = scalar_lea.vmem [#allocation0], 136
    %78 = vst [vmem:[%s77] sm:%s3] %v76
    %s79 = smul.addr 4, 16
    %s80 = scalar_lea.vmem %s0, %s79
    %v81 = vld [vmem:[%s80] sm:%s3]
    %s82 = scalar_lea.vmem [#allocation0], 128
    %83 = vst [vmem:[%s82] sm:%s3] %v81
    %s84 = smul.addr 4, 15
    %s85 = scalar_lea.vmem %s0, %s84
    %v86 = vld [vmem:[%s85] sm:%s3]
    %s87 = scalar_lea.vmem [#allocation0], 120
    %88 = vst [vmem:[%s87] sm:%s3] %v86
    %s89 = smul.addr 4, 14
    %s90 = scalar_lea.vmem %s0, %s89
    %v91 = vld [vmem:[%s90] sm:%s3]
    %s92 = scalar_lea.vmem [#allocation0], 112
    %93 = vst [vmem:[%s92] sm:%s3] %v91
    %s94 = smul.addr 4, 13
    %s95 = scalar_lea.vmem %s0, %s94
    %v96 = vld [vmem:[%s95] sm:%s3]
    %s97 = scalar_lea.vmem [#allocation0], 104
    %98 = vst [vmem:[%s97] sm:%s3] %v96
    %s99 = smul.addr 4, 12
    %s100 = scalar_lea.vmem %s0, %s99
    %v101 = vld [vmem:[%s100] sm:%s3]
    %s102 = scalar_lea.vmem [#allocation0], 96
    %103 = vst [vmem:[%s102] sm:%s3] %v101
    %s104 = smul.addr 4, 11
    %s105 = scalar_lea.vmem %s0, %s104
    %v106 = vld [vmem:[%s105] sm:%s3]
    %s107 = scalar_lea.vmem [#allocation0], 88
    %108 = vst [vmem:[%s107] sm:%s3] %v106
    %s109 = smul.addr 4, 10
    %s110 = scalar_lea.vmem %s0, %s109
    %v111 = vld [vmem:[%s110] sm:%s3]
    %s112 = scalar_lea.vmem [#allocation0], 80
    %113 = vst [vmem:[%s112] sm:%s3] %v111
    %s114 = smul.addr 4, 9
    %s115 = scalar_lea.vmem %s0, %s114
    %v116 = vld [vmem:[%s115] sm:%s3]
    %s117 = scalar_lea.vmem [#allocation0], 72
    %118 = vst [vmem:[%s117] sm:%s3] %v116
    %s119 = smul.addr 4, 8
    %s120 = scalar_lea.vmem %s0, %s119
    %v121 = vld [vmem:[%s120] sm:%s3]
    %s122 = scalar_lea.vmem [#allocation0], 64
    %123 = vst [vmem:[%s122] sm:%s3] %v121
    %s124 = smul.addr 4, 7
    %s125 = scalar_lea.vmem %s0, %s124
    %v126 = vld [vmem:[%s125] sm:%s3]
    %s127 = scalar_lea.vmem [#allocation0], 56
    %128 = vst [vmem:[%s127] sm:%s3] %v126
    %s129 = smul.addr 4, 6
    %s130 = scalar_lea.vmem %s0, %s129
    %v131 = vld [vmem:[%s130] sm:%s3]
    %s132 = scalar_lea.vmem [#allocation0], 48
    %133 = vst [vmem:[%s132] sm:%s3] %v131
    %s134 = smul.addr 4, 5
    %s135 = scalar_lea.vmem %s0, %s134
    %v136 = vld [vmem:[%s135] sm:%s3]
    %s137 = scalar_lea.vmem [#allocation0], 40
    %138 = vst [vmem:[%s137] sm:%s3] %v136
    %s139 = smul.addr 4, 4
    %s140 = scalar_lea.vmem %s0, %s139
    %v141 = vld [vmem:[%s140] sm:%s3]
    %s142 = scalar_lea.vmem [#allocation0], 32
    %143 = vst [vmem:[%s142] sm:%s3] %v141
    %s144 = smul.addr 4, 3
    %s145 = scalar_lea.vmem %s0, %s144
    %v146 = vld [vmem:[%s145] sm:%s3]
    %s147 = scalar_lea.vmem [#allocation0], 24
    %148 = vst [vmem:[%s147] sm:%s3] %v146
    %s149 = smul.addr 4, 2
    %s150 = scalar_lea.vmem %s0, %s149
    %v151 = vld [vmem:[%s150] sm:%s3]
    %s152 = scalar_lea.vmem [#allocation0], 16
    %153 = vst [vmem:[%s152] sm:%s3] %v151
    %s154 = scalar_lea.vmem %s0, 4
    %v155 = vld [vmem:[%s154] sm:%s3]
    %s156 = scalar_lea.vmem [#allocation0], 8
    %157 = vst [vmem:[%s156] sm:%s3] %v155
    %v158 = vld [vmem:[%s0] sm:%s3]
    %159 = vst [vmem:[#allocation0] sm:%s3] %v158
    %v160 = vld [vmem:[#allocation0] ss:$8 sm:$0xf]
    %v161 = vld [vmem:[#allocation0] ss:$8 sm:$0xf0]
    %vm162 = vcmask 1047556
    %v163 = vsel %vm162, %v161, %v160
    %vm164 = vcmask 261120
    %165 = vst.msk [vmem:[%s1] sm:$0xff] %vm164, %v163
    %s166 = scalar_lea.vmem [#allocation0], 64
    %v167 = vld [vmem:[%s166] ss:$8 sm:$0xf]
    %s168 = scalar_lea.vmem [#allocation0], 64
    %v169 = vld [vmem:[%s168] ss:$8 sm:$0xf0]
    %vm170 = vcmask 1047556
    %v171 = vsel %vm170, %v169, %v167
    %vm172 = vcmask 261120
    %s173 = scalar_lea.vmem %s1, 8
    %174 = vst.msk [vmem:[%s173] sm:$0xff] %vm172, %v171
    %s175 = scalar_lea.vmem [#allocation0], 128
    %v176 = vld [vmem:[%s175] ss:$8 sm:$0xf]
    %s177 = scalar_lea.vmem [#allocation0], 128
    %v178 = vld [vmem:[%s177] ss:$8 sm:$0xf0]
    %vm179 = vcmask 1047556
    %v180 = vsel %vm179, %v178, %v176
    %vm181 = vcmask 261120
    %s182 = scalar_lea.vmem %s1, 16
    %183 = vst.msk [vmem:[%s182] sm:$0xff] %vm181, %v180
    %s184 = scalar_lea.vmem [#allocation0], 192
    %v185 = vld [vmem:[%s184] ss:$8 sm:$0xf]
    %s186 = scalar_lea.vmem [#allocation0], 192
    %v187 = vld [vmem:[%s186] ss:$8 sm:$0xf0]
    %vm188 = vcmask 1047556
    %v189 = vsel %vm188, %v187, %v185
    %vm190 = vcmask 261120
    %s191 = scalar_lea.vmem %s1, 24
    %192 = vst.msk [vmem:[%s191] sm:$0xff] %vm190, %v189
    %s193 = scalar_lea.vmem [#allocation0], 3
    %v194 = vld [vmem:[%s193] ss:$8 sm:$0xf]
    %s195 = scalar_lea.vmem [#allocation0], 3
    %v196 = vld [vmem:[%s195] ss:$8 sm:$0xf0]
    %vm197 = vcmask 1047556
    %v198 = vsel %vm197, %v196, %v194
    %199 = vrot.lane.b32.xlu0 %v198, 96
    %v200 = vpop.permute.xlu0 %199
    %vm201 = vcmask 1048320
    %202 = vst.msk [vmem:[%s1] sm:$0xff] %vm201, %v200
    %s203 = scalar_lea.vmem [#allocation0], 67
    %v204 = vld [vmem:[%s203] ss:$8 sm:$0xf]
    %s205 = scalar_lea.vmem [#allocation0], 67
    %v206 = vld [vmem:[%s205] ss:$8 sm:$0xf0]
    %vm207 = vcmask 1047556
    %v208 = vsel %vm207, %v206, %v204
    %209 = vrot.lane.b32.xlu0 %v208, 96
    %v210 = vpop.permute.xlu0 %209
    %vm211 = vcmask 1048320
    %s212 = scalar_lea.vmem %s1, 8
    %213 = vst.msk [vmem:[%s212] sm:$0xff] %vm211, %v210
    %s214 = scalar_lea.vmem [#allocation0], 131
    %v215 = vld [vmem:[%s214] ss:$8 sm:$0xf]
    %s216 = scalar_lea.vmem [#allocation0], 131
    %v217 = vld [vmem:[%s216] ss:$8 sm:$0xf0]
    %vm218 = vcmask 1047556
    %v219 = vsel %vm218, %v217, %v215
    %220 = vrot.lane.b32.xlu0 %v219, 96
    %v221 = vpop.permute.xlu0 %220
    %vm222 = vcmask 1048320
    %s223 = scalar_lea.vmem %s1, 16
    %224 = vst.msk [vmem:[%s223] sm:$0xff] %vm222, %v221
    %s225 = scalar_lea.vmem [#allocation0], 195
    %v226 = vld [vmem:[%s225] ss:$8 sm:$0xf]
    %s227 = scalar_lea.vmem [#allocation0], 195
    %v228 = vld [vmem:[%s227] ss:$8 sm:$0xf0]
    %vm229 = vcmask 1047556
    %v230 = vsel %vm229, %v228, %v226
    %231 = vrot.lane.b32.xlu0 %v230, 96
    %v232 = vpop.permute.xlu0 %231
    %vm233 = vcmask 1048320
    %s234 = scalar_lea.vmem %s1, 24
    %235 = vst.msk [vmem:[%s234] sm:$0xff] %vm233, %v232
    %s236 = scalar_lea.vmem [#allocation0], 2
    %v237 = vld [vmem:[%s236] ss:$8 sm:$0xf]
    %s238 = scalar_lea.vmem [#allocation0], 2
    %v239 = vld [vmem:[%s238] ss:$8 sm:$0xf0]
    %vm240 = vcmask 1047556
    %v241 = vsel %vm240, %v239, %v237
    %242 = vrot.lane.b32.xlu0 %v241, 64
    %v243 = vpop.permute.xlu0 %242
    %vm244 = vcmask 785920
    %245 = vst.msk [vmem:[%s1] sm:$0xff] %vm244, %v243
    %s246 = scalar_lea.vmem [#allocation0], 66
    %v247 = vld [vmem:[%s246] ss:$8 sm:$0xf]
    %s248 = scalar_lea.vmem [#allocation0], 66
    %v249 = vld [vmem:[%s248] ss:$8 sm:$0xf0]
    %vm250 = vcmask 1047556
    %v251 = vsel %vm250, %v249, %v247
    %252 = vrot.lane.b32.xlu0 %v251, 64
    %v253 = vpop.permute.xlu0 %252
    %vm254 = vcmask 785920
    %s255 = scalar_lea.vmem %s1, 8
    %256 = vst.msk [vmem:[%s255] sm:$0xff] %vm254, %v253
    %s257 = scalar_lea.vmem [#allocation0], 130
    %v258 = vld [vmem:[%s257] ss:$8 sm:$0xf]
    %s259 = scalar_lea.vmem [#allocation0], 130
    %v260 = vld [vmem:[%s259] ss:$8 sm:$0xf0]
    %vm261 = vcmask 1047556
    %v262 = vsel %vm261, %v260, %v258
    %263 = vrot.lane.b32.xlu0 %v262, 64
    %v264 = vpop.permute.xlu0 %263
    %vm265 = vcmask 785920
    %s266 = scalar_lea.vmem %s1, 16
    %267 = vst.msk [vmem:[%s266] sm:$0xff] %vm265, %v264
    %s268 = scalar_lea.vmem [#allocation0], 194
    %v269 = vld [vmem:[%s268] ss:$8 sm:$0xf]
    %s270 = scalar_lea.vmem [#allocation0], 194
    %v271 = vld [vmem:[%s270] ss:$8 sm:$0xf0]
    %vm272 = vcmask 1047556
    %v273 = vsel %vm272, %v271, %v269
    %274 = vrot.lane.b32.xlu0 %v273, 64
    %v275 = vpop.permute.xlu0 %274
    %vm276 = vcmask 785920
    %s277 = scalar_lea.vmem %s1, 24
    %278 = vst.msk [vmem:[%s277] sm:$0xff] %vm276, %v275
    %s279 = scalar_lea.vmem [#allocation0], 1
    %v280 = vld [vmem:[%s279] ss:$8 sm:$0xf]
    %s281 = scalar_lea.vmem [#allocation0], 1
    %v282 = vld [vmem:[%s281] ss:$8 sm:$0xf0]
    %vm283 = vcmask 1047556
    %v284 = vsel %vm283, %v282, %v280
    %285 = vrot.lane.b32.xlu0 %v284, 32
    %v286 = vpop.permute.xlu0 %285
    %vm287 = vcmask 523520
    %288 = vst.msk [vmem:[%s1] sm:$0xff] %vm287, %v286
    %s289 = scalar_lea.vmem [#allocation0], 65
    %v290 = vld [vmem:[%s289] ss:$8 sm:$0xf]
    %s291 = scalar_lea.vmem [#allocation0], 65
    %v292 = vld [vmem:[%s291] ss:$8 sm:$0xf0]
    %vm293 = vcmask 1047556
    %v294 = vsel %vm293, %v292, %v290
    %295 = vrot.lane.b32.xlu0 %v294, 32
    %v296 = vpop.permute.xlu0 %295
    %vm297 = vcmask 523520
    %s298 = scalar_lea.vmem %s1, 8
    %299 = vst.msk [vmem:[%s298] sm:$0xff] %vm297, %v296
    %s300 = scalar_lea.vmem [#allocation0], 129
    %v301 = vld [vmem:[%s300] ss:$8 sm:$0xf]
    %s302 = scalar_lea.vmem [#allocation0], 129
    %v303 = vld [vmem:[%s302] ss:$8 sm:$0xf0]
    %vm304 = vcmask 1047556
    %v305 = vsel %vm304, %v303, %v301
    %306 = vrot.lane.b32.xlu0 %v305, 32
    %v307 = vpop.permute.xlu0 %306
    %vm308 = vcmask 523520
    %s309 = scalar_lea.vmem %s1, 16
    %310 = vst.msk [vmem:[%s309] sm:$0xff] %vm308, %v307
    %s311 = scalar_lea.vmem [#allocation0], 193
    %v312 = vld [vmem:[%s311] ss:$8 sm:$0xf]
    %s313 = scalar_lea.vmem [#allocation0], 193
    %v314 = vld [vmem:[%s313] ss:$8 sm:$0xf0]
    %vm315 = vcmask 1047556
    %v316 = vsel %vm315, %v314, %v312
    %317 = vrot.lane.b32.xlu0 %v316, 32
    %v318 = vpop.permute.xlu0 %317
    %vm319 = vcmask 523520
    %s320 = scalar_lea.vmem %s1, 24
    %321 = vst.msk [vmem:[%s320] sm:$0xff] %vm319, %v318

// kernel: tile.18
$region0: #{tile.18}
  #allocation0 [shape = 's32[1]{0}', space=sflag, size = 0x4, scoped, tag = 'scoped memory for tile.18']
  %s0 = inlined_call_operand.vmem [shape: f32[32], index: 0, kind: input, shape index: {}]
  %s1 = inlined_call_operand.vmem [shape: f32[4,32], index: 1, kind: output, shape index: {}]
  // Predicated region
  $region2: #{tile.18} parent=0 // pred_check
    _
  $region3: #{tile.18} parent=0 // pred_check_branch
    %3 = sbr.rel (0) target = $region5
  $region4: #{tile.18} parent=0 // pred_region
    _
  $region5: #{tile.18} parent=0 // pred_fallthru
    _
  %v4 = vld [vmem:[%s0] ss:$0 sm:$0xff]
  %5 = vst [vmem:[%s1] sm:$0xf] %v4

// kernel: tile.19
$region0: #{tile.19}
  %s0 = inlined_call_operand.vmem [shape: f32[4,32], index: 0, kind: input, shape index: {}]
  %s1 = inlined_call_operand.vmem [shape: f32[128], index: 1, kind: output, shape index: {}]
  $region1: #{tile.19} parent=0
    #allocation0 [shape = 'u8[4096]{0}', space=vmem, size = 0x1000, scoped, tag = 'scoped mem for output reshape']
    #allocation1 [shape = 'u8[4096]{0}', space=vmem, size = 0x1000, scoped, tag = 'scoped mem for input reshape']
    %s3 = sshllo.u32 0, 4
    %v4 = vld [vmem:[%s0] sm:%s3]
    %5 = vst [vmem:[#allocation1] sm:%s3] %v4
    %v6 = vld [vmem:[#allocation1] sm:$0x1]
    %vm7 = vcmask 261120
    %8 = vst.msk [vmem:[#allocation0] sm:$0x1] %vm7, %v6
    %s9 = scalar_lea.vmem [#allocation1], 3
    %v10 = vld [vmem:[%s9] sm:$0x1]
    %11 = vrot.lane.b32.xlu0 %v10, 96
    %v12 = vpop.permute.xlu0 %11
    %vm13 = vcmask 1048320
    %14 = vst.msk [vmem:[#allocation0] sm:$0x1] %vm13, %v12
    %s15 = scalar_lea.vmem [#allocation1], 2
    %v16 = vld [vmem:[%s15] sm:$0x1]
    %17 = vrot.lane.b32.xlu0 %v16, 64
    %v18 = vpop.permute.xlu0 %17
    %vm19 = vcmask 785920
    %20 = vst.msk [vmem:[#allocation0] sm:$0x1] %vm19, %v18
    %s21 = scalar_lea.vmem [#allocation1], 1
    %v22 = vld [vmem:[%s21] sm:$0x1]
    %23 = vrot.lane.b32.xlu0 %v22, 32
    %v24 = vpop.permute.xlu0 %23
    %vm25 = vcmask 523520
    %26 = vst.msk [vmem:[#allocation0] sm:$0x1] %vm25, %v24
    %s28 = sshllo.u32 0, 1
    %v30 = vld [vmem:[#allocation0] sm:%s28]
    %s31 = sshllo.u32 0, 1
    %32 = vst [vmem:[%s1] sm:%s31] %v30

// kernel: _forward_vmap_jit.1
$region0: #{_forward_vmap_jit.1}
  #allocation0 [shape = 'u32[]', space=smem, size = 0x4, offset = 0x4, fixed_abs, tag = 'smem constant byte address 0x4 - core index']
  #allocation1 [shape = 'u32[144,128]{1,0:T(1,128)}', space=vmem, size = 0x12000, scoped, tag = 'internal scratch']
  %s0 = inlined_call_operand.vmem [shape: f32[8,8], index: 0, kind: input, shape index: {}]
  %s1 = inlined_call_operand.vmem [shape: f32[8,16], index: 1, kind: input, shape index: {}]
  %s2 = inlined_call_operand.vmem [shape: f32[32,8], index: 2, kind: input, shape index: {}]
  %s3 = inlined_call_operand.vmem [shape: f32[1,32], index: 3, kind: input, shape index: {}]
  %s4 = inlined_call_operand.vmem [shape: f32[896,32], index: 4, kind: input, shape index: {}]
  %s5 = inlined_call_operand.vmem [shape: f32[1,896], index: 5, kind: input, shape index: {}]
  %s6 = inlined_call_operand.vmem [shape: f32[16,512], index: 6, kind: input, shape index: {}]
  %s7 = inlined_call_operand.vmem [shape: f32[512,128], index: 7, kind: input, shape index: {}]
  %s8 = inlined_call_operand.vmem [shape: f32[128,128], index: 8, kind: input, shape index: {}]
  %s9 = inlined_call_operand.vmem [shape: f32[8,128], index: 9, kind: output, shape index: {}]
  %s10 = sld [smem:[#allocation0]]
  $region46: #{_forward_vmap_jit.1} parent=0
    _
  %s12 = ssub.s32 1, %s10
  %s13 = scalar_select 0, %s12, %s10
  // Predicated region
  $region2: #{_forward_vmap_jit.1} parent=0 // pred_check
    _
  $region3: #{_forward_vmap_jit.1} parent=0 // pred_check_branch
    %15 = sbr.rel (0) target = $region5
  $region4: #{_forward_vmap_jit.1} parent=0 // pred_region
    _
  $region5: #{_forward_vmap_jit.1} parent=0 // pred_fallthru
    _
  // Predicated region
  $region6: #{_forward_vmap_jit.1} parent=0 // pred_check
    _
  $region7: #{_forward_vmap_jit.1} parent=0 // pred_check_branch
    %17 = sbr.rel (0) target = $region9
  $region8: #{_forward_vmap_jit.1} parent=0 // pred_region
    _
  $region9: #{_forward_vmap_jit.1} parent=0 // pred_fallthru
    _
  // Predicated region
  $region10: #{_forward_vmap_jit.1} parent=0 // pred_check
    _
  $region11: #{_forward_vmap_jit.1} parent=0 // pred_check_branch
    %19 = sbr.rel (0) target = $region13
  $region12: #{_forward_vmap_jit.1} parent=0 // pred_region
    _
  $region13: #{_forward_vmap_jit.1} parent=0 // pred_fallthru
    _
  // Predicated region
  $region14: #{_forward_vmap_jit.1} parent=0 // pred_check
    _
  $region15: #{_forward_vmap_jit.1} parent=0 // pred_check_branch
    %21 = sbr.rel (0) target = $region17
  $region16: #{_forward_vmap_jit.1} parent=0 // pred_region
    _
  $region17: #{_forward_vmap_jit.1} parent=0 // pred_fallthru
    _
  // Predicated region
  $region18: #{_forward_vmap_jit.1} parent=0 // pred_check
    _
  $region19: #{_forward_vmap_jit.1} parent=0 // pred_check_branch
    %23 = sbr.rel (0) target = $region21
  $region20: #{_forward_vmap_jit.1} parent=0 // pred_region
    _
  $region21: #{_forward_vmap_jit.1} parent=0 // pred_fallthru
    _
  // Predicated region
  $region22: #{_forward_vmap_jit.1} parent=0 // pred_check
    _
  $region23: #{_forward_vmap_jit.1} parent=0 // pred_check_branch
    %25 = sbr.rel (0) target = $region25
  $region24: #{_forward_vmap_jit.1} parent=0 // pred_region
    _
  $region25: #{_forward_vmap_jit.1} parent=0 // pred_fallthru
    _
  // Predicated region
  $region26: #{_forward_vmap_jit.1} parent=0 // pred_check
    _
  $region27: #{_forward_vmap_jit.1} parent=0 // pred_check_branch
    %27 = sbr.rel (0) target = $region29
  $region28: #{_forward_vmap_jit.1} parent=0 // pred_region
    _
  $region29: #{_forward_vmap_jit.1} parent=0 // pred_fallthru
    _
  // Predicated region
  $region30: #{_forward_vmap_jit.1} parent=0 // pred_check
    _
  $region31: #{_forward_vmap_jit.1} parent=0 // pred_check_branch
    %29 = sbr.rel (0) target = $region33
  $region32: #{_forward_vmap_jit.1} parent=0 // pred_region
    _
  $region33: #{_forward_vmap_jit.1} parent=0 // pred_fallthru
    _
  // Predicated region
  $region34: #{_forward_vmap_jit.1} parent=0 // pred_check
    _
  $region35: #{_forward_vmap_jit.1} parent=0 // pred_check_branch
    %31 = sbr.rel (0) target = $region37
  $region36: #{_forward_vmap_jit.1} parent=0 // pred_region
    _
  $region37: #{_forward_vmap_jit.1} parent=0 // pred_fallthru
    _
  %v32 = vld [vmem:[%s0] sm:$0xff]
  %v33 = vld [vmem:[%s1] sm:$0xff]
  %v34 = vld [vmem:[%s2] sm:$0xff]
  %v35 = vld [vmem:[%s2 + $0x8] sm:$0xff]
  %v36 = vld [vmem:[%s2 + $0x10] sm:$0xff]
  %v37 = vld [vmem:[%s2 + $0x18] sm:$0xff]
  %v38 = vld [vmem:[%s3] sm:$0x1]
  %v40 = vlaneseq
  %v41 = vshrl.u32 %v40, 7
  %v42 = vsub.s32 0, %v41
  %v43 = vrot.slane %v38, %v42
  %vm45 = vcmask 64512
  %v47 = vsel %vm45, %v32, 0
  %v50 = vsel %vm45, %v34, 0
  %v53 = vsel %vm45, %v35, 0
  %v56 = vsel %vm45, %v36, 0
  %v59 = vsel %vm45, %v37, 0
  %61 = vmatprep.subr.mxu0 0.0
  %62 = vmatpush1.xpose.msra.mxu0 %v50
  %63 = vmatprep.subr.mxu0 0.0
  %64 = vmatpush1.xpose.msra.mxu0 %v53
  %65 = vmatprep.subr.mxu0 0.0
  %66 = vmatpush1.xpose.msra.mxu0 %v56
  %67 = vmatprep.subr.mxu0 0.0
  %68 = vmatpush1.xpose.msra.mxu0 %v59
  %69 = vmatprep.subr.mxu0 0.0
  %70 = vmatpush1.xpose.msra.mxu0 0.0
  %71 = vmatprep.subr.mxu0 0.0
  %72 = vmatpush1.xpose.msra.mxu0 0.0
  %73 = vmatprep.subr.mxu0 0.0
  %74 = vmatpush1.xpose.msra.mxu0 0.0
  %75 = vmatprep.subr.mxu0 0.0
  %76 = vmatpush1.xpose.msra.mxu0 0.0
  %77 = vmatprep.subr.mxu0 0.0
  %78 = vmatpush1.xpose.msra.mxu0 0.0
  %79 = vmatprep.subr.mxu0 0.0
  %80 = vmatpush1.xpose.msra.mxu0 0.0
  %81 = vmatprep.subr.mxu0 0.0
  %82 = vmatpush1.xpose.msra.mxu0 0.0
  %83 = vmatprep.subr.mxu0 0.0
  %84 = vmatpush1.xpose.msra.mxu0 0.0
  %85 = vmatprep.subr.mxu0 0.0
  %86 = vmatpush1.xpose.msra.mxu0 0.0
  %87 = vmatprep.subr.mxu0 0.0
  %88 = vmatpush1.xpose.msra.mxu0 0.0
  %89 = vmatprep.subr.mxu0 0.0
  %90 = vmatpush1.xpose.msra.mxu0 0.0
  %91 = vmatprep.subr.mxu0 0.0
  %92 = vmatpush1.xpose.msra.mxu0 0.0
  %93 = vmatprep.subr.mxu0 0.0
  %94 = vmatpush1.xpose.msra.mxu0 0.0
  %95 = vmatprep.subr.mxu0 0.0
  %96 = vmatpush1.xpose.msra.mxu0 0.0
  %97 = vmatprep.subr.mxu0 0.0
  %98 = vmatpush1.xpose.msra.mxu0 0.0
  %99 = vmatprep.subr.mxu0 0.0
  %100 = vmatpush1.xpose.msra.mxu0 0.0
  %101 = vmatprep.subr.mxu0 0.0
  %102 = vmatpush1.xpose.msra.mxu0 0.0
  %103 = vmatprep.subr.mxu0 0.0
  %104 = vmatpush1.xpose.msra.mxu0 0.0
  %105 = vmatprep.subr.mxu0 0.0
  %106 = vmatpush1.xpose.msra.mxu0 0.0
  %107 = vmatprep.subr.mxu0 0.0
  %108 = vmatpush1.xpose.msra.mxu0 0.0
  %109 = vmatprep.subr.mxu0 0.0
  %110 = vmatpush1.xpose.msra.mxu0 0.0
  %111 = vmatprep.subr.mxu0 0.0
  %112 = vmatpush1.xpose.msra.mxu0 0.0
  %113 = vmatprep.subr.mxu0 0.0
  %114 = vmatpush1.xpose.msra.mxu0 0.0
  %115 = vmatprep.subr.mxu0 0.0
  %116 = vmatpush1.xpose.msra.mxu0 0.0
  %117 = vmatprep.subr.mxu0 0.0
  %118 = vmatpush1.xpose.msra.mxu0 0.0
  %119 = vmatprep.subr.mxu0 0.0
  %120 = vmatpush1.xpose.msra.mxu0 0.0
  %121 = vmatprep.subr.mxu0 0.0
  %122 = vmatpush1.xpose.msra.mxu0 0.0
  %123 = vmatprep.subr.mxu0 0.0
  %124 = vmatpush1.xpose.msra.mxu0 0.0
  %125 = vmatprep.mubr.f32.mxu0 0.0
  %126 = vmatmul.mubr.f32.gmra.mrb[0].mxu0 %v47
  %v127 = vpop.f32.mrb[0].mxu0
  %v128 = vadd.f32 %v43, %v127
  %v129 = vpop.f32.mrb[0].mxu0
  %130 = vdwg.mxu0
  %v131 = vtanh.pop %v128
  %v132 = vld [vmem:[%s4] sm:$0xff]
  %v133 = vld [vmem:[%s4 + $0x8] sm:$0xff]
  %v134 = vld [vmem:[%s4 + $0x10] sm:$0xff]
  %v135 = vld [vmem:[%s4 + $0x18] sm:$0xff]
  %v136 = vld [vmem:[%s4 + $0x20] sm:$0xff]
  %v137 = vld [vmem:[%s4 + $0x28] sm:$0xff]
  %v138 = vld [vmem:[%s4 + $0x30] sm:$0xff]
  %v139 = vld [vmem:[%s4 + $0x38] sm:$0xff]
  %v140 = vld [vmem:[%s4 + $0x40] sm:$0xff]
  %v141 = vld [vmem:[%s4 + $0x48] sm:$0xff]
  %v142 = vld [vmem:[%s4 + $0x50] sm:$0xff]
  %v143 = vld [vmem:[%s4 + $0x58] sm:$0xff]
  %v144 = vld [vmem:[%s4 + $0x60] sm:$0xff]
  %v145 = vld [vmem:[%s4 + $0x68] sm:$0xff]
  %v146 = vld [vmem:[%s4 + $0x70] sm:$0xff]
  %v147 = vld [vmem:[%s4 + $0x78] sm:$0xff]
  %v148 = vld [vmem:[%s4 + $0x80] sm:$0xff]
  %v149 = vld [vmem:[%s4 + $0x88] sm:$0xff]
  %v150 = vld [vmem:[%s4 + $0x90] sm:$0xff]
  %v151 = vld [vmem:[%s4 + $0x98] sm:$0xff]
  %v152 = vld [vmem:[%s4 + $0xa0] sm:$0xff]
  %v153 = vld [vmem:[%s4 + $0xa8] sm:$0xff]
  %v154 = vld [vmem:[%s4 + $0xb0] sm:$0xff]
  %v155 = vld [vmem:[%s4 + $0xb8] sm:$0xff]
  %v156 = vld [vmem:[%s4 + $0xc0] sm:$0xff]
  %v157 = vld [vmem:[%s4 + $0xc8] sm:$0xff]
  %v158 = vld [vmem:[%s4 + $0xd0] sm:$0xff]
  %v159 = vld [vmem:[%s4 + $0xd8] sm:$0xff]
  %v160 = vld [vmem:[%s4 + $0xe0] sm:$0xff]
  %v161 = vld [vmem:[%s4 + $0xe8] sm:$0xff]
  %v162 = vld [vmem:[%s4 + $0xf0] sm:$0xff]
  %v163 = vld [vmem:[%s4 + $0xf8] sm:$0xff]
  %v164 = vld [vmem:[%s4 + $0x100] sm:$0xff]
  %v165 = vld [vmem:[%s4 + $0x108] sm:$0xff]
  %v166 = vld [vmem:[%s4 + $0x110] sm:$0xff]
  %v167 = vld [vmem:[%s4 + $0x118] sm:$0xff]
  %v168 = vld [vmem:[%s4 + $0x120] sm:$0xff]
  %v169 = vld [vmem:[%s4 + $0x128] sm:$0xff]
  %v170 = vld [vmem:[%s4 + $0x130] sm:$0xff]
  %v171 = vld [vmem:[%s4 + $0x138] sm:$0xff]
  %v172 = vld [vmem:[%s4 + $0x140] sm:$0xff]
  %v173 = vld [vmem:[%s4 + $0x148] sm:$0xff]
  %v174 = vld [vmem:[%s4 + $0x150] sm:$0xff]
  %v175 = vld [vmem:[%s4 + $0x158] sm:$0xff]
  %v176 = vld [vmem:[%s4 + $0x160] sm:$0xff]
  %v177 = vld [vmem:[%s4 + $0x168] sm:$0xff]
  %v178 = vld [vmem:[%s4 + $0x170] sm:$0xff]
  %v179 = vld [vmem:[%s4 + $0x178] sm:$0xff]
  %v180 = vld [vmem:[%s4 + $0x180] sm:$0xff]
  %v181 = vld [vmem:[%s4 + $0x188] sm:$0xff]
  %v182 = vld [vmem:[%s4 + $0x190] sm:$0xff]
  %v183 = vld [vmem:[%s4 + $0x198] sm:$0xff]
  %v184 = vld [vmem:[%s4 + $0x1a0] sm:$0xff]
  %v185 = vld [vmem:[%s4 + $0x1a8] sm:$0xff]
  %v186 = vld [vmem:[%s4 + $0x1b0] sm:$0xff]
  %v187 = vld [vmem:[%s4 + $0x1b8] sm:$0xff]
  %v188 = vld [vmem:[%s4 + $0x1c0] sm:$0xff]
  %v189 = vld [vmem:[%s4 + $0x1c8] sm:$0xff]
  %v190 = vld [vmem:[%s4 + $0x1d0] sm:$0xff]
  %v191 = vld [vmem:[%s4 + $0x1d8] sm:$0xff]
  %v192 = vld [vmem:[%s4 + $0x1e0] sm:$0xff]
  %v193 = vld [vmem:[%s4 + $0x1e8] sm:$0xff]
  %v194 = vld [vmem:[%s4 + $0x1f0] sm:$0xff]
  %v195 = vld [vmem:[%s4 + $0x1f8] sm:$0xff]
  %v196 = vld [vmem:[%s4 + $0x200] sm:$0xff]
  %v197 = vld [vmem:[%s4 + $0x208] sm:$0xff]
  %v198 = vld [vmem:[%s4 + $0x210] sm:$0xff]
  %v199 = vld [vmem:[%s4 + $0x218] sm:$0xff]
  %v200 = vld [vmem:[%s4 + $0x220] sm:$0xff]
  %v201 = vld [vmem:[%s4 + $0x228] sm:$0xff]
  %v202 = vld [vmem:[%s4 + $0x230] sm:$0xff]
  %v203 = vld [vmem:[%s4 + $0x238] sm:$0xff]
  %v204 = vld [vmem:[%s4 + $0x240] sm:$0xff]
  %v205 = vld [vmem:[%s4 + $0x248] sm:$0xff]
  %v206 = vld [vmem:[%s4 + $0x250] sm:$0xff]
  %v207 = vld [vmem:[%s4 + $0x258] sm:$0xff]
  %v208 = vld [vmem:[%s4 + $0x260] sm:$0xff]
  %v209 = vld [vmem:[%s4 + $0x268] sm:$0xff]
  %v210 = vld [vmem:[%s4 + $0x270] sm:$0xff]
  %v211 = vld [vmem:[%s4 + $0x278] sm:$0xff]
  %v212 = vld [vmem:[%s4 + $0x280] sm:$0xff]
  %v213 = vld [vmem:[%s4 + $0x288] sm:$0xff]
  %v214 = vld [vmem:[%s4 + $0x290] sm:$0xff]
  %v215 = vld [vmem:[%s4 + $0x298] sm:$0xff]
  %v216 = vld [vmem:[%s4 + $0x2a0] sm:$0xff]
  %v217 = vld [vmem:[%s4 + $0x2a8] sm:$0xff]
  %v218 = vld [vmem:[%s4 + $0x2b0] sm:$0xff]
  %v219 = vld [vmem:[%s4 + $0x2b8] sm:$0xff]
  %v220 = vld [vmem:[%s4 + $0x2c0] sm:$0xff]
  %v221 = vld [vmem:[%s4 + $0x2c8] sm:$0xff]
  %v222 = vld [vmem:[%s4 + $0x2d0] sm:$0xff]
  %v223 = vld [vmem:[%s4 + $0x2d8] sm:$0xff]
  %v224 = vld [vmem:[%s4 + $0x2e0] sm:$0xff]
  %v225 = vld [vmem:[%s4 + $0x2e8] sm:$0xff]
  %v226 = vld [vmem:[%s4 + $0x2f0] sm:$0xff]
  %v227 = vld [vmem:[%s4 + $0x2f8] sm:$0xff]
  %v228 = vld [vmem:[%s4 + $0x300] sm:$0xff]
  %v229 = vld [vmem:[%s4 + $0x308] sm:$0xff]
  %v230 = vld [vmem:[%s4 + $0x310] sm:$0xff]
  %v231 = vld [vmem:[%s4 + $0x318] sm:$0xff]
  %v232 = vld [vmem:[%s4 + $0x320] sm:$0xff]
  %v233 = vld [vmem:[%s4 + $0x328] sm:$0xff]
  %v234 = vld [vmem:[%s4 + $0x330] sm:$0xff]
  %v235 = vld [vmem:[%s4 + $0x338] sm:$0xff]
  %v236 = vld [vmem:[%s4 + $0x340] sm:$0xff]
  %v237 = vld [vmem:[%s4 + $0x348] sm:$0xff]
  %v238 = vld [vmem:[%s4 + $0x350] sm:$0xff]
  %v239 = vld [vmem:[%s4 + $0x358] sm:$0xff]
  %v240 = vld [vmem:[%s4 + $0x360] sm:$0xff]
  %v241 = vld [vmem:[%s4 + $0x368] sm:$0xff]
  %v242 = vld [vmem:[%s4 + $0x370] sm:$0xff]
  %v243 = vld [vmem:[%s4 + $0x378] sm:$0xff]
  %v244 = vld [vmem:[%s5] sm:$0xff]
  %v246 = vlaneseq
  %v247 = vshrl.u32 %v246, 7
  %v248 = vsub.s32 0, %v247
  %v249 = vrot.slane %v244, %v248
  %v250 = vlaneseq
  %v251 = vshrl.u32 %v250, 7
  %v252 = vsub.s32 1, %v251
  %v253 = vrot.slane %v244, %v252
  %v254 = vlaneseq
  %v255 = vshrl.u32 %v254, 7
  %v256 = vsub.s32 2, %v255
  %v257 = vrot.slane %v244, %v256
  %v258 = vlaneseq
  %v259 = vshrl.u32 %v258, 7
  %v260 = vsub.s32 3, %v259
  %v261 = vrot.slane %v244, %v260
  %v262 = vlaneseq
  %v263 = vshrl.u32 %v262, 7
  %v264 = vsub.s32 4, %v263
  %v265 = vrot.slane %v244, %v264
  %v266 = vlaneseq
  %v267 = vshrl.u32 %v266, 7
  %v268 = vsub.s32 5, %v267
  %v269 = vrot.slane %v244, %v268
  %v270 = vlaneseq
  %v271 = vshrl.u32 %v270, 7
  %v272 = vsub.s32 6, %v271
  %v273 = vrot.slane %v244, %v272
  %vm281 = vcmask 261120
  %v283 = vsel %vm281, %v131, 0
  %v286 = vsel %vm281, %v132, 0
  %v289 = vsel %vm281, %v133, 0
  %v292 = vsel %vm281, %v134, 0
  %v295 = vsel %vm281, %v135, 0
  %v298 = vsel %vm281, %v136, 0
  %v301 = vsel %vm281, %v137, 0
  %v304 = vsel %vm281, %v138, 0
  %v307 = vsel %vm281, %v139, 0
  %v310 = vsel %vm281, %v140, 0
  %v313 = vsel %vm281, %v141, 0
  %v316 = vsel %vm281, %v142, 0
  %v319 = vsel %vm281, %v143, 0
  %v322 = vsel %vm281, %v144, 0
  %v325 = vsel %vm281, %v145, 0
  %v328 = vsel %vm281, %v146, 0
  %v331 = vsel %vm281, %v147, 0
  %v334 = vsel %vm281, %v148, 0
  %v337 = vsel %vm281, %v149, 0
  %v340 = vsel %vm281, %v150, 0
  %v343 = vsel %vm281, %v151, 0
  %v346 = vsel %vm281, %v152, 0
  %v349 = vsel %vm281, %v153, 0
  %v352 = vsel %vm281, %v154, 0
  %v355 = vsel %vm281, %v155, 0
  %v358 = vsel %vm281, %v156, 0
  %v361 = vsel %vm281, %v157, 0
  %v364 = vsel %vm281, %v158, 0
  %v367 = vsel %vm281, %v159, 0
  %v370 = vsel %vm281, %v160, 0
  %v373 = vsel %vm281, %v161, 0
  %v376 = vsel %vm281, %v162, 0
  %v379 = vsel %vm281, %v163, 0
  %v382 = vsel %vm281, %v164, 0
  %v385 = vsel %vm281, %v165, 0
  %v388 = vsel %vm281, %v166, 0
  %v391 = vsel %vm281, %v167, 0
  %v394 = vsel %vm281, %v168, 0
  %v397 = vsel %vm281, %v169, 0
  %v400 = vsel %vm281, %v170, 0
  %v403 = vsel %vm281, %v171, 0
  %v406 = vsel %vm281, %v172, 0
  %v409 = vsel %vm281, %v173, 0
  %v412 = vsel %vm281, %v174, 0
  %v415 = vsel %vm281, %v175, 0
  %v418 = vsel %vm281, %v176, 0
  %v421 = vsel %vm281, %v177, 0
  %v424 = vsel %vm281, %v178, 0
  %v427 = vsel %vm281, %v179, 0
  %v430 = vsel %vm281, %v180, 0
  %v433 = vsel %vm281, %v181, 0
  %v436 = vsel %vm281, %v182, 0
  %v439 = vsel %vm281, %v183, 0
  %v442 = vsel %vm281, %v184, 0
  %v445 = vsel %vm281, %v185, 0
  %v448 = vsel %vm281, %v186, 0
  %v451 = vsel %vm281, %v187, 0
  %v454 = vsel %vm281, %v188, 0
  %v457 = vsel %vm281, %v189, 0
  %v460 = vsel %vm281, %v190, 0
  %v463 = vsel %vm281, %v191, 0
  %v466 = vsel %vm281, %v192, 0
  %v469 = vsel %vm281, %v193, 0
  %v472 = vsel %vm281, %v194, 0
  %v475 = vsel %vm281, %v195, 0
  %v478 = vsel %vm281, %v196, 0
  %v481 = vsel %vm281, %v197, 0
  %v484 = vsel %vm281, %v198, 0
  %v487 = vsel %vm281, %v199, 0
  %v490 = vsel %vm281, %v200, 0
  %v493 = vsel %vm281, %v201, 0
  %v496 = vsel %vm281, %v202, 0
  %v499 = vsel %vm281, %v203, 0
  %v502 = vsel %vm281, %v204, 0
  %v505 = vsel %vm281, %v205, 0
  %v508 = vsel %vm281, %v206, 0
  %v511 = vsel %vm281, %v207, 0
  %v514 = vsel %vm281, %v208, 0
  %v517 = vsel %vm281, %v209, 0
  %v520 = vsel %vm281, %v210, 0
  %v523 = vsel %vm281, %v211, 0
  %v526 = vsel %vm281, %v212, 0
  %v529 = vsel %vm281, %v213, 0
  %v532 = vsel %vm281, %v214, 0
  %v535 = vsel %vm281, %v215, 0
  %v538 = vsel %vm281, %v216, 0
  %v541 = vsel %vm281, %v217, 0
  %v544 = vsel %vm281, %v218, 0
  %v547 = vsel %vm281, %v219, 0
  %v550 = vsel %vm281, %v220, 0
  %v553 = vsel %vm281, %v221, 0
  %v556 = vsel %vm281, %v222, 0
  %v559 = vsel %vm281, %v223, 0
  %v562 = vsel %vm281, %v224, 0
  %v565 = vsel %vm281, %v225, 0
  %v568 = vsel %vm281, %v226, 0
  %v571 = vsel %vm281, %v227, 0
  %v574 = vsel %vm281, %v228, 0
  %v577 = vsel %vm281, %v229, 0
  %v580 = vsel %vm281, %v230, 0
  %v583 = vsel %vm281, %v231, 0
  %v586 = vsel %vm281, %v232, 0
  %v589 = vsel %vm281, %v233, 0
  %v592 = vsel %vm281, %v234, 0
  %v595 = vsel %vm281, %v235, 0
  %v598 = vsel %vm281, %v236, 0
  %v601 = vsel %vm281, %v237, 0
  %v604 = vsel %vm281, %v238, 0
  %v607 = vsel %vm281, %v239, 0
  %v610 = vsel %vm281, %v240, 0
  %v613 = vsel %vm281, %v241, 0
  %v616 = vsel %vm281, %v242, 0
  %v619 = vsel %vm281, %v243, 0
  %621 = vmatprep.subr.mxu0 0.0
  %622 = vmatpush1.xpose.msra.mxu0 %v286
  %623 = vmatprep.subr.mxu0 0.0
  %624 = vmatpush1.xpose.msra.mxu0 %v289
  %625 = vmatprep.subr.mxu0 0.0
  %626 = vmatpush1.xpose.msra.mxu0 %v292
  %627 = vmatprep.subr.mxu0 0.0
  %628 = vmatpush1.xpose.msra.mxu0 %v295
  %629 = vmatprep.subr.mxu0 0.0
  %630 = vmatpush1.xpose.msra.mxu0 %v298
  %631 = vmatprep.subr.mxu0 0.0
  %632 = vmatpush1.xpose.msra.mxu0 %v301
  %633 = vmatprep.subr.mxu0 0.0
  %634 = vmatpush1.xpose.msra.mxu0 %v304
  %635 = vmatprep.subr.mxu0 0.0
  %636 = vmatpush1.xpose.msra.mxu0 %v307
  %637 = vmatprep.subr.mxu0 0.0
  %638 = vmatpush1.xpose.msra.mxu0 %v310
  %639 = vmatprep.subr.mxu0 0.0
  %640 = vmatpush1.xpose.msra.mxu0 %v313
  %641 = vmatprep.subr.mxu0 0.0
  %642 = vmatpush1.xpose.msra.mxu0 %v316
  %643 = vmatprep.subr.mxu0 0.0
  %644 = vmatpush1.xpose.msra.mxu0 %v319
  %645 = vmatprep.subr.mxu0 0.0
  %646 = vmatpush1.xpose.msra.mxu0 %v322
  %647 = vmatprep.subr.mxu0 0.0
  %648 = vmatpush1.xpose.msra.mxu0 %v325
  %649 = vmatprep.subr.mxu0 0.0
  %650 = vmatpush1.xpose.msra.mxu0 %v328
  %651 = vmatprep.subr.mxu0 0.0
  %652 = vmatpush1.xpose.msra.mxu0 %v331
  %653 = vmatprep.subr.mxu0 0.0
  %654 = vmatpush1.xpose.msra.mxu0 %v334
  %655 = vmatprep.subr.mxu0 0.0
  %656 = vmatpush1.xpose.msra.mxu0 %v337
  %657 = vmatprep.subr.mxu0 0.0
  %658 = vmatpush1.xpose.msra.mxu0 %v340
  %659 = vmatprep.subr.mxu0 0.0
  %660 = vmatpush1.xpose.msra.mxu0 %v343
  %661 = vmatprep.subr.mxu0 0.0
  %662 = vmatpush1.xpose.msra.mxu0 %v346
  %663 = vmatprep.subr.mxu0 0.0
  %664 = vmatpush1.xpose.msra.mxu0 %v349
  %665 = vmatprep.subr.mxu0 0.0
  %666 = vmatpush1.xpose.msra.mxu0 %v352
  %667 = vmatprep.subr.mxu0 0.0
  %668 = vmatpush1.xpose.msra.mxu0 %v355
  %669 = vmatprep.subr.mxu0 0.0
  %670 = vmatpush1.xpose.msra.mxu0 %v358
  %671 = vmatprep.subr.mxu0 0.0
  %672 = vmatpush1.xpose.msra.mxu0 %v361
  %673 = vmatprep.subr.mxu0 0.0
  %674 = vmatpush1.xpose.msra.mxu0 %v364
  %675 = vmatprep.subr.mxu0 0.0
  %676 = vmatpush1.xpose.msra.mxu0 %v367
  %677 = vmatprep.subr.mxu0 0.0
  %678 = vmatpush1.xpose.msra.mxu0 %v370
  %679 = vmatprep.subr.mxu0 0.0
  %680 = vmatpush1.xpose.msra.mxu0 %v373
  %681 = vmatprep.subr.mxu0 0.0
  %682 = vmatpush1.xpose.msra.mxu0 %v376
  %683 = vmatprep.subr.mxu0 0.0
  %684 = vmatpush1.xpose.msra.mxu0 %v379
  %685 = vmatprep.mubr.f32.mxu0 0.0
  %686 = vmatmul.mubr.f32.gmra.mrb[0].mxu0 %v283
  %v687 = vpop.f32.mrb[0].mxu0
  %v688 = vadd.f32 %v249, %v687
  %v689 = vpop.f32.mrb[0].mxu0
  %v690 = vadd.f32 %v253, %v689
  %691 = vdwg.mxu0
  %692 = vmatprep.subr.mxu0 0.0
  %693 = vmatpush1.xpose.msra.mxu0 %v382
  %694 = vmatprep.subr.mxu0 0.0
  %695 = vmatpush1.xpose.msra.mxu0 %v385
  %696 = vmatprep.subr.mxu0 0.0
  %697 = vmatpush1.xpose.msra.mxu0 %v388
  %698 = vmatprep.subr.mxu0 0.0
  %699 = vmatpush1.xpose.msra.mxu0 %v391
  %700 = vmatprep.subr.mxu0 0.0
  %701 = vmatpush1.xpose.msra.mxu0 %v394
  %702 = vmatprep.subr.mxu0 0.0
  %703 = vmatpush1.xpose.msra.mxu0 %v397
  %704 = vmatprep.subr.mxu0 0.0
  %705 = vmatpush1.xpose.msra.mxu0 %v400
  %706 = vmatprep.subr.mxu0 0.0
  %707 = vmatpush1.xpose.msra.mxu0 %v403
  %708 = vmatprep.subr.mxu0 0.0
  %709 = vmatpush1.xpose.msra.mxu0 %v406
  %710 = vmatprep.subr.mxu0 0.0
  %711 = vmatpush1.xpose.msra.mxu0 %v409
  %712 = vmatprep.subr.mxu0 0.0
  %713 = vmatpush1.xpose.msra.mxu0 %v412
  %714 = vmatprep.subr.mxu0 0.0
  %715 = vmatpush1.xpose.msra.mxu0 %v415
  %716 = vmatprep.subr.mxu0 0.0
  %717 = vmatpush1.xpose.msra.mxu0 %v418
  %718 = vmatprep.subr.mxu0 0.0
  %719 = vmatpush1.xpose.msra.mxu0 %v421
  %720 = vmatprep.subr.mxu0 0.0
  %721 = vmatpush1.xpose.msra.mxu0 %v424
  %722 = vmatprep.subr.mxu0 0.0
  %723 = vmatpush1.xpose.msra.mxu0 %v427
  %724 = vmatprep.subr.mxu0 0.0
  %725 = vmatpush1.xpose.msra.mxu0 %v430
  %726 = vmatprep.subr.mxu0 0.0
  %727 = vmatpush1.xpose.msra.mxu0 %v433
  %728 = vmatprep.subr.mxu0 0.0
  %729 = vmatpush1.xpose.msra.mxu0 %v436
  %730 = vmatprep.subr.mxu0 0.0
  %731 = vmatpush1.xpose.msra.mxu0 %v439
  %732 = vmatprep.subr.mxu0 0.0
  %733 = vmatpush1.xpose.msra.mxu0 %v442
  %734 = vmatprep.subr.mxu0 0.0
  %735 = vmatpush1.xpose.msra.mxu0 %v445
  %736 = vmatprep.subr.mxu0 0.0
  %737 = vmatpush1.xpose.msra.mxu0 %v448
  %738 = vmatprep.subr.mxu0 0.0
  %739 = vmatpush1.xpose.msra.mxu0 %v451
  %740 = vmatprep.subr.mxu0 0.0
  %741 = vmatpush1.xpose.msra.mxu0 %v454
  %742 = vmatprep.subr.mxu0 0.0
  %743 = vmatpush1.xpose.msra.mxu0 %v457
  %744 = vmatprep.subr.mxu0 0.0
  %745 = vmatpush1.xpose.msra.mxu0 %v460
  %746 = vmatprep.subr.mxu0 0.0
  %747 = vmatpush1.xpose.msra.mxu0 %v463
  %748 = vmatprep.subr.mxu0 0.0
  %749 = vmatpush1.xpose.msra.mxu0 %v466
  %750 = vmatprep.subr.mxu0 0.0
  %751 = vmatpush1.xpose.msra.mxu0 %v469
  %752 = vmatprep.subr.mxu0 0.0
  %753 = vmatpush1.xpose.msra.mxu0 %v472
  %754 = vmatprep.subr.mxu0 0.0
  %755 = vmatpush1.xpose.msra.mxu0 %v475
  %756 = vmatprep.mubr.f32.mxu0 0.0
  %757 = vmatmul.mubr.f32.gmra.mrb[0].mxu0 %v283
  %v758 = vpop.f32.mrb[0].mxu0
  %v759 = vadd.f32 %v257, %v758
  %v760 = vpop.f32.mrb[0].mxu0
  %v761 = vadd.f32 %v261, %v760
  %762 = vdwg.mxu0
  %763 = vmatprep.subr.mxu0 0.0
  %764 = vmatpush1.xpose.msra.mxu0 %v478
  %765 = vmatprep.subr.mxu0 0.0
  %766 = vmatpush1.xpose.msra.mxu0 %v481
  %767 = vmatprep.subr.mxu0 0.0
  %768 = vmatpush1.xpose.msra.mxu0 %v484
  %769 = vmatprep.subr.mxu0 0.0
  %770 = vmatpush1.xpose.msra.mxu0 %v487
  %771 = vmatprep.subr.mxu0 0.0
  %772 = vmatpush1.xpose.msra.mxu0 %v490
  %773 = vmatprep.subr.mxu0 0.0
  %774 = vmatpush1.xpose.msra.mxu0 %v493
  %775 = vmatprep.subr.mxu0 0.0
  %776 = vmatpush1.xpose.msra.mxu0 %v496
  %777 = vmatprep.subr.mxu0 0.0
  %778 = vmatpush1.xpose.msra.mxu0 %v499
  %779 = vmatprep.subr.mxu0 0.0
  %780 = vmatpush1.xpose.msra.mxu0 %v502
  %781 = vmatprep.subr.mxu0 0.0
  %782 = vmatpush1.xpose.msra.mxu0 %v505
  %783 = vmatprep.subr.mxu0 0.0
  %784 = vmatpush1.xpose.msra.mxu0 %v508
  %785 = vmatprep.subr.mxu0 0.0
  %786 = vmatpush1.xpose.msra.mxu0 %v511
  %787 = vmatprep.subr.mxu0 0.0
  %788 = vmatpush1.xpose.msra.mxu0 %v514
  %789 = vmatprep.subr.mxu0 0.0
  %790 = vmatpush1.xpose.msra.mxu0 %v517
  %791 = vmatprep.subr.mxu0 0.0
  %792 = vmatpush1.xpose.msra.mxu0 %v520
  %793 = vmatprep.subr.mxu0 0.0
  %794 = vmatpush1.xpose.msra.mxu0 %v523
  %795 = vmatprep.subr.mxu0 0.0
  %796 = vmatpush1.xpose.msra.mxu0 %v526
  %797 = vmatprep.subr.mxu0 0.0
  %798 = vmatpush1.xpose.msra.mxu0 %v529
  %799 = vmatprep.subr.mxu0 0.0
  %800 = vmatpush1.xpose.msra.mxu0 %v532
  %801 = vmatprep.subr.mxu0 0.0
  %802 = vmatpush1.xpose.msra.mxu0 %v535
  %803 = vmatprep.subr.mxu0 0.0
  %804 = vmatpush1.xpose.msra.mxu0 %v538
  %805 = vmatprep.subr.mxu0 0.0
  %806 = vmatpush1.xpose.msra.mxu0 %v541
  %807 = vmatprep.subr.mxu0 0.0
  %808 = vmatpush1.xpose.msra.mxu0 %v544
  %809 = vmatprep.subr.mxu0 0.0
  %810 = vmatpush1.xpose.msra.mxu0 %v547
  %811 = vmatprep.subr.mxu0 0.0
  %812 = vmatpush1.xpose.msra.mxu0 %v550
  %813 = vmatprep.subr.mxu0 0.0
  %814 = vmatpush1.xpose.msra.mxu0 %v553
  %815 = vmatprep.subr.mxu0 0.0
  %816 = vmatpush1.xpose.msra.mxu0 %v556
  %817 = vmatprep.subr.mxu0 0.0
  %818 = vmatpush1.xpose.msra.mxu0 %v559
  %819 = vmatprep.subr.mxu0 0.0
  %820 = vmatpush1.xpose.msra.mxu0 %v562
  %821 = vmatprep.subr.mxu0 0.0
  %822 = vmatpush1.xpose.msra.mxu0 %v565
  %823 = vmatprep.subr.mxu0 0.0
  %824 = vmatpush1.xpose.msra.mxu0 %v568
  %825 = vmatprep.subr.mxu0 0.0
  %826 = vmatpush1.xpose.msra.mxu0 %v571
  %827 = vmatprep.mubr.f32.mxu0 0.0
  %828 = vmatmul.mubr.f32.gmra.mrb[0].mxu0 %v283
  %v829 = vpop.f32.mrb[0].mxu0
  %v830 = vadd.f32 %v265, %v829
  %v831 = vpop.f32.mrb[0].mxu0
  %v832 = vadd.f32 %v269, %v831
  %833 = vdwg.mxu0
  %834 = vmatprep.subr.mxu0 0.0
  %835 = vmatpush1.xpose.msra.mxu0 %v574
  %836 = vmatprep.subr.mxu0 0.0
  %837 = vmatpush1.xpose.msra.mxu0 %v577
  %838 = vmatprep.subr.mxu0 0.0
  %839 = vmatpush1.xpose.msra.mxu0 %v580
  %840 = vmatprep.subr.mxu0 0.0
  %841 = vmatpush1.xpose.msra.mxu0 %v583
  %842 = vmatprep.subr.mxu0 0.0
  %843 = vmatpush1.xpose.msra.mxu0 %v586
  %844 = vmatprep.subr.mxu0 0.0
  %845 = vmatpush1.xpose.msra.mxu0 %v589
  %846 = vmatprep.subr.mxu0 0.0
  %847 = vmatpush1.xpose.msra.mxu0 %v592
  %848 = vmatprep.subr.mxu0 0.0
  %849 = vmatpush1.xpose.msra.mxu0 %v595
  %850 = vmatprep.subr.mxu0 0.0
  %851 = vmatpush1.xpose.msra.mxu0 %v598
  %852 = vmatprep.subr.mxu0 0.0
  %853 = vmatpush1.xpose.msra.mxu0 %v601
  %854 = vmatprep.subr.mxu0 0.0
  %855 = vmatpush1.xpose.msra.mxu0 %v604
  %856 = vmatprep.subr.mxu0 0.0
  %857 = vmatpush1.xpose.msra.mxu0 %v607
  %858 = vmatprep.subr.mxu0 0.0
  %859 = vmatpush1.xpose.msra.mxu0 %v610
  %860 = vmatprep.subr.mxu0 0.0
  %861 = vmatpush1.xpose.msra.mxu0 %v613
  %862 = vmatprep.subr.mxu0 0.0
  %863 = vmatpush1.xpose.msra.mxu0 %v616
  %864 = vmatprep.subr.mxu0 0.0
  %865 = vmatpush1.xpose.msra.mxu0 %v619
  %866 = vmatprep.subr.mxu0 0.0
  %867 = vmatpush1.xpose.msra.mxu0 0.0
  %868 = vmatprep.subr.mxu0 0.0
  %869 = vmatpush1.xpose.msra.mxu0 0.0
  %870 = vmatprep.subr.mxu0 0.0
  %871 = vmatpush1.xpose.msra.mxu0 0.0
  %872 = vmatprep.subr.mxu0 0.0
  %873 = vmatpush1.xpose.msra.mxu0 0.0
  %874 = vmatprep.subr.mxu0 0.0
  %875 = vmatpush1.xpose.msra.mxu0 0.0
  %876 = vmatprep.subr.mxu0 0.0
  %877 = vmatpush1.xpose.msra.mxu0 0.0
  %878 = vmatprep.subr.mxu0 0.0
  %879 = vmatpush1.xpose.msra.mxu0 0.0
  %880 = vmatprep.subr.mxu0 0.0
  %881 = vmatpush1.xpose.msra.mxu0 0.0
  %882 = vmatprep.subr.mxu0 0.0
  %883 = vmatpush1.xpose.msra.mxu0 0.0
  %884 = vmatprep.subr.mxu0 0.0
  %885 = vmatpush1.xpose.msra.mxu0 0.0
  %886 = vmatprep.subr.mxu0 0.0
  %887 = vmatpush1.xpose.msra.mxu0 0.0
  %888 = vmatprep.subr.mxu0 0.0
  %889 = vmatpush1.xpose.msra.mxu0 0.0
  %890 = vmatprep.subr.mxu0 0.0
  %891 = vmatpush1.xpose.msra.mxu0 0.0
  %892 = vmatprep.subr.mxu0 0.0
  %893 = vmatpush1.xpose.msra.mxu0 0.0
  %894 = vmatprep.subr.mxu0 0.0
  %895 = vmatpush1.xpose.msra.mxu0 0.0
  %896 = vmatprep.subr.mxu0 0.0
  %897 = vmatpush1.xpose.msra.mxu0 0.0
  %898 = vmatprep.mubr.f32.mxu0 0.0
  %899 = vmatmul.mubr.f32.gmra.mrb[0].mxu0 %v283
  %v900 = vpop.f32.mrb[0].mxu0
  %v901 = vadd.f32 %v273, %v900
  %v902 = vpop.f32.mrb[0].mxu0
  %903 = vdwg.mxu0
  %v904 = vld [vmem:[%s6] sm:$0xff]
  %v905 = vld [vmem:[%s6 + $0x8] sm:$0xff]
  %v906 = vld [vmem:[%s6 + $0x10] sm:$0xff]
  %v907 = vld [vmem:[%s6 + $0x18] sm:$0xff]
  %v908 = vld [vmem:[%s6 + $0x20] sm:$0xff]
  %v909 = vld [vmem:[%s6 + $0x28] sm:$0xff]
  %v910 = vld [vmem:[%s6 + $0x30] sm:$0xff]
  %v911 = vld [vmem:[%s6 + $0x38] sm:$0xff]
  %vm912 = vcmask 130048
  %v914 = vsel %vm912, %v33, 0
  %916 = vmatprep.subr.mxu0 %v905
  %917 = vmatpush1.msra.mxu0 %v904
  %918 = vmatprep.subr.mxu0 %v909
  %919 = vmatpush1.msra.mxu0 %v908
  %920 = vmatprep.subr.mxu0 0.0
  %921 = vmatpush1.msra.mxu0 0.0
  %922 = vmatprep.subr.mxu0 0.0
  %923 = vmatpush1.msra.mxu0 0.0
  %924 = vmatprep.subr.mxu0 0.0
  %925 = vmatpush1.msra.mxu0 0.0
  %926 = vmatprep.subr.mxu0 0.0
  %927 = vmatpush1.msra.mxu0 0.0
  %928 = vmatprep.subr.mxu0 0.0
  %929 = vmatpush1.msra.mxu0 0.0
  %930 = vmatprep.subr.mxu0 0.0
  %931 = vmatpush1.msra.mxu0 0.0
  %932 = vmatprep.subr.mxu0 0.0
  %933 = vmatpush1.msra.mxu0 0.0
  %934 = vmatprep.subr.mxu0 0.0
  %935 = vmatpush1.msra.mxu0 0.0
  %936 = vmatprep.subr.mxu0 0.0
  %937 = vmatpush1.msra.mxu0 0.0
  %938 = vmatprep.subr.mxu0 0.0
  %939 = vmatpush1.msra.mxu0 0.0
  %940 = vmatprep.subr.mxu0 0.0
  %941 = vmatpush1.msra.mxu0 0.0
  %942 = vmatprep.subr.mxu0 0.0
  %943 = vmatpush1.msra.mxu0 0.0
  %944 = vmatprep.subr.mxu0 0.0
  %945 = vmatpush1.msra.mxu0 0.0
  %946 = vmatprep.subr.mxu0 0.0
  %947 = vmatpush1.msra.mxu0 0.0
  %948 = vmatprep.subr.mxu0 0.0
  %949 = vmatpush1.msra.mxu0 0.0
  %950 = vmatprep.subr.mxu0 0.0
  %951 = vmatpush1.msra.mxu0 0.0
  %952 = vmatprep.subr.mxu0 0.0
  %953 = vmatpush1.msra.mxu0 0.0
  %954 = vmatprep.subr.mxu0 0.0
  %955 = vmatpush1.msra.mxu0 0.0
  %956 = vmatprep.subr.mxu0 0.0
  %957 = vmatpush1.msra.mxu0 0.0
  %958 = vmatprep.subr.mxu0 0.0
  %959 = vmatpush1.msra.mxu0 0.0
  %960 = vmatprep.subr.mxu0 0.0
  %961 = vmatpush1.msra.mxu0 0.0
  %962 = vmatprep.subr.mxu0 0.0
  %963 = vmatpush1.msra.mxu0 0.0
  %964 = vmatprep.subr.mxu0 0.0
  %965 = vmatpush1.msra.mxu0 0.0
  %966 = vmatprep.subr.mxu0 0.0
  %967 = vmatpush1.msra.mxu0 0.0
  %968 = vmatprep.subr.mxu0 0.0
  %969 = vmatpush1.msra.mxu0 0.0
  %970 = vmatprep.subr.mxu0 0.0
  %971 = vmatpush1.msra.mxu0 0.0
  %972 = vmatprep.subr.mxu0 0.0
  %973 = vmatpush1.msra.mxu0 0.0
  %974 = vmatprep.subr.mxu0 0.0
  %975 = vmatpush1.msra.mxu0 0.0
  %976 = vmatprep.subr.mxu0 0.0
  %977 = vmatpush1.msra.mxu0 0.0
  %978 = vmatprep.subr.mxu0 0.0
  %979 = vmatpush1.msra.mxu0 0.0
  %980 = vmatprep.mubr.f32.mxu0 0.0
  %981 = vmatmul.mubr.f32.gmra.mrb[0].mxu0 %v914
  %v982 = vpop.f32.mrb[0].mxu0
  %v983 = vadd.f32 0.0, %v982
  %v984 = vpop.f32.mrb[0].mxu0
  %v985 = vadd.f32 0.0, %v984
  %986 = vdwg.mxu0
  %987 = vmatprep.subr.mxu0 %v907
  %988 = vmatpush1.msra.mxu0 %v906
  %989 = vmatprep.subr.mxu0 %v911
  %990 = vmatpush1.msra.mxu0 %v910
  %991 = vmatprep.subr.mxu0 0.0
  %992 = vmatpush1.msra.mxu0 0.0
  %993 = vmatprep.subr.mxu0 0.0
  %994 = vmatpush1.msra.mxu0 0.0
  %995 = vmatprep.subr.mxu0 0.0
  %996 = vmatpush1.msra.mxu0 0.0
  %997 = vmatprep.subr.mxu0 0.0
  %998 = vmatpush1.msra.mxu0 0.0
  %999 = vmatprep.subr.mxu0 0.0
  %1000 = vmatpush1.msra.mxu0 0.0
  %1001 = vmatprep.subr.mxu0 0.0
  %1002 = vmatpush1.msra.mxu0 0.0
  %1003 = vmatprep.subr.mxu0 0.0
  %1004 = vmatpush1.msra.mxu0 0.0
  %1005 = vmatprep.subr.mxu0 0.0
  %1006 = vmatpush1.msra.mxu0 0.0
  %1007 = vmatprep.subr.mxu0 0.0
  %1008 = vmatpush1.msra.mxu0 0.0
  %1009 = vmatprep.subr.mxu0 0.0
  %1010 = vmatpush1.msra.mxu0 0.0
  %1011 = vmatprep.subr.mxu0 0.0
  %1012 = vmatpush1.msra.mxu0 0.0
  %1013 = vmatprep.subr.mxu0 0.0
  %1014 = vmatpush1.msra.mxu0 0.0
  %1015 = vmatprep.subr.mxu0 0.0
  %1016 = vmatpush1.msra.mxu0 0.0
  %1017 = vmatprep.subr.mxu0 0.0
  %1018 = vmatpush1.msra.mxu0 0.0
  %1019 = vmatprep.subr.mxu0 0.0
  %1020 = vmatpush1.msra.mxu0 0.0
  %1021 = vmatprep.subr.mxu0 0.0
  %1022 = vmatpush1.msra.mxu0 0.0
  %1023 = vmatprep.subr.mxu0 0.0
  %1024 = vmatpush1.msra.mxu0 0.0
  %1025 = vmatprep.subr.mxu0 0.0
  %1026 = vmatpush1.msra.mxu0 0.0
  %1027 = vmatprep.subr.mxu0 0.0
  %1028 = vmatpush1.msra.mxu0 0.0
  %1029 = vmatprep.subr.mxu0 0.0
  %1030 = vmatpush1.msra.mxu0 0.0
  %1031 = vmatprep.subr.mxu0 0.0
  %1032 = vmatpush1.msra.mxu0 0.0
  %1033 = vmatprep.subr.mxu0 0.0
  %1034 = vmatpush1.msra.mxu0 0.0
  %1035 = vmatprep.subr.mxu0 0.0
  %1036 = vmatpush1.msra.mxu0 0.0
  %1037 = vmatprep.subr.mxu0 0.0
  %1038 = vmatpush1.msra.mxu0 0.0
  %1039 = vmatprep.subr.mxu0 0.0
  %1040 = vmatpush1.msra.mxu0 0.0
  %1041 = vmatprep.subr.mxu0 0.0
  %1042 = vmatpush1.msra.mxu0 0.0
  %1043 = vmatprep.subr.mxu0 0.0
  %1044 = vmatpush1.msra.mxu0 0.0
  %1045 = vmatprep.subr.mxu0 0.0
  %1046 = vmatpush1.msra.mxu0 0.0
  %1047 = vmatprep.subr.mxu0 0.0
  %1048 = vmatpush1.msra.mxu0 0.0
  %1049 = vmatprep.subr.mxu0 0.0
  %1050 = vmatpush1.msra.mxu0 0.0
  %1051 = vmatprep.mubr.f32.mxu0 0.0
  %1052 = vmatmul.mubr.f32.gmra.mrb[0].mxu0 %v914
  %v1053 = vpop.f32.mrb[0].mxu0
  %v1054 = vadd.f32 0.0, %v1053
  %v1055 = vpop.f32.mrb[0].mxu0
  %v1056 = vadd.f32 0.0, %v1055
  %1057 = vdwg.mxu0
  %v1058 = vmul.f32 %v688, %v983
  %v1059 = vmul.f32 %v690, %v985
  %v1060 = vmul.f32 %v759, %v1054
  %v1061 = vmul.f32 %v761, %v1056
  %v1062 = vld [vmem:[%s7] sm:$0xff]
  %v1063 = vld [vmem:[%s7 + $0x8] sm:$0xff]
  %v1064 = vld [vmem:[%s7 + $0x10] sm:$0xff]
  %v1065 = vld [vmem:[%s7 + $0x18] sm:$0xff]
  %v1066 = vld [vmem:[%s7 + $0x20] sm:$0xff]
  %v1067 = vld [vmem:[%s7 + $0x28] sm:$0xff]
  %v1068 = vld [vmem:[%s7 + $0x30] sm:$0xff]
  %v1069 = vld [vmem:[%s7 + $0x38] sm:$0xff]
  %v1070 = vld [vmem:[%s7 + $0x40] sm:$0xff]
  %v1071 = vld [vmem:[%s7 + $0x48] sm:$0xff]
  %v1072 = vld [vmem:[%s7 + $0x50] sm:$0xff]
  %v1073 = vld [vmem:[%s7 + $0x58] sm:$0xff]
  %v1074 = vld [vmem:[%s7 + $0x60] sm:$0xff]
  %v1075 = vld [vmem:[%s7 + $0x68] sm:$0xff]
  %v1076 = vld [vmem:[%s7 + $0x70] sm:$0xff]
  %v1077 = vld [vmem:[%s7 + $0x78] sm:$0xff]
  %v1078 = vld [vmem:[%s7 + $0x80] sm:$0xff]
  %v1079 = vld [vmem:[%s7 + $0x88] sm:$0xff]
  %v1080 = vld [vmem:[%s7 + $0x90] sm:$0xff]
  %v1081 = vld [vmem:[%s7 + $0x98] sm:$0xff]
  %v1082 = vld [vmem:[%s7 + $0xa0] sm:$0xff]
  %v1083 = vld [vmem:[%s7 + $0xa8] sm:$0xff]
  %v1084 = vld [vmem:[%s7 + $0xb0] sm:$0xff]
  %v1085 = vld [vmem:[%s7 + $0xb8] sm:$0xff]
  %v1086 = vld [vmem:[%s7 + $0xc0] sm:$0xff]
  %v1087 = vld [vmem:[%s7 + $0xc8] sm:$0xff]
  %v1088 = vld [vmem:[%s7 + $0xd0] sm:$0xff]
  %v1089 = vld [vmem:[%s7 + $0xd8] sm:$0xff]
  %v1090 = vld [vmem:[%s7 + $0xe0] sm:$0xff]
  %v1091 = vld [vmem:[%s7 + $0xe8] sm:$0xff]
  %v1092 = vld [vmem:[%s7 + $0xf0] sm:$0xff]
  %v1093 = vld [vmem:[%s7 + $0xf8] sm:$0xff]
  %v1094 = vld [vmem:[%s7 + $0x100] sm:$0xff]
  %v1095 = vld [vmem:[%s7 + $0x108] sm:$0xff]
  %v1096 = vld [vmem:[%s7 + $0x110] sm:$0xff]
  %v1097 = vld [vmem:[%s7 + $0x118] sm:$0xff]
  %v1098 = vld [vmem:[%s7 + $0x120] sm:$0xff]
  %v1099 = vld [vmem:[%s7 + $0x128] sm:$0xff]
  %v1100 = vld [vmem:[%s7 + $0x130] sm:$0xff]
  %v1101 = vld [vmem:[%s7 + $0x138] sm:$0xff]
  %v1102 = vld [vmem:[%s7 + $0x140] sm:$0xff]
  %v1103 = vld [vmem:[%s7 + $0x148] sm:$0xff]
  %v1104 = vld [vmem:[%s7 + $0x150] sm:$0xff]
  %v1105 = vld [vmem:[%s7 + $0x158] sm:$0xff]
  %v1106 = vld [vmem:[%s7 + $0x160] sm:$0xff]
  %v1107 = vld [vmem:[%s7 + $0x168] sm:$0xff]
  %v1108 = vld [vmem:[%s7 + $0x170] sm:$0xff]
  %v1109 = vld [vmem:[%s7 + $0x178] sm:$0xff]
  %v1110 = vld [vmem:[%s7 + $0x180] sm:$0xff]
  %v1111 = vld [vmem:[%s7 + $0x188] sm:$0xff]
  %v1112 = vld [vmem:[%s7 + $0x190] sm:$0xff]
  %v1113 = vld [vmem:[%s7 + $0x198] sm:$0xff]
  %v1114 = vld [vmem:[%s7 + $0x1a0] sm:$0xff]
  %v1115 = vld [vmem:[%s7 + $0x1a8] sm:$0xff]
  %v1116 = vld [vmem:[%s7 + $0x1b0] sm:$0xff]
  %v1117 = vld [vmem:[%s7 + $0x1b8] sm:$0xff]
  %v1118 = vld [vmem:[%s7 + $0x1c0] sm:$0xff]
  %v1119 = vld [vmem:[%s7 + $0x1c8] sm:$0xff]
  %v1120 = vld [vmem:[%s7 + $0x1d0] sm:$0xff]
  %v1121 = vld [vmem:[%s7 + $0x1d8] sm:$0xff]
  %v1122 = vld [vmem:[%s7 + $0x1e0] sm:$0xff]
  %v1123 = vld [vmem:[%s7 + $0x1e8] sm:$0xff]
  %v1124 = vld [vmem:[%s7 + $0x1f0] sm:$0xff]
  %v1125 = vld [vmem:[%s7 + $0x1f8] sm:$0xff]
  %1126 = vmatprep.subr.mxu0 0.0
  %1127 = vmatpush1.msra.mxu0 %v1062
  %1128 = vmatprep.subr.mxu0 0.0
  %1129 = vmatpush1.msra.mxu0 %v1063
  %1130 = vmatprep.subr.mxu0 0.0
  %1131 = vmatpush1.msra.mxu0 %v1064
  %1132 = vmatprep.subr.mxu0 0.0
  %1133 = vmatpush1.msra.mxu0 %v1065
  %1134 = vmatprep.subr.mxu0 0.0
  %1135 = vmatpush1.msra.mxu0 %v1066
  %1136 = vmatprep.subr.mxu0 0.0
  %1137 = vmatpush1.msra.mxu0 %v1067
  %1138 = vmatprep.subr.mxu0 0.0
  %1139 = vmatpush1.msra.mxu0 %v1068
  %1140 = vmatprep.subr.mxu0 0.0
  %1141 = vmatpush1.msra.mxu0 %v1069
  %1142 = vmatprep.subr.mxu0 0.0
  %1143 = vmatpush1.msra.mxu0 %v1070
  %1144 = vmatprep.subr.mxu0 0.0
  %1145 = vmatpush1.msra.mxu0 %v1071
  %1146 = vmatprep.subr.mxu0 0.0
  %1147 = vmatpush1.msra.mxu0 %v1072
  %1148 = vmatprep.subr.mxu0 0.0
  %1149 = vmatpush1.msra.mxu0 %v1073
  %1150 = vmatprep.subr.mxu0 0.0
  %1151 = vmatpush1.msra.mxu0 %v1074
  %1152 = vmatprep.subr.mxu0 0.0
  %1153 = vmatpush1.msra.mxu0 %v1075
  %1154 = vmatprep.subr.mxu0 0.0
  %1155 = vmatpush1.msra.mxu0 %v1076
  %1156 = vmatprep.subr.mxu0 0.0
  %1157 = vmatpush1.msra.mxu0 %v1077
  %1158 = vmatprep.subr.mxu0 0.0
  %1159 = vmatpush1.msra.mxu0 %v1078
  %1160 = vmatprep.subr.mxu0 0.0
  %1161 = vmatpush1.msra.mxu0 %v1079
  %1162 = vmatprep.subr.mxu0 0.0
  %1163 = vmatpush1.msra.mxu0 %v1080
  %1164 = vmatprep.subr.mxu0 0.0
  %1165 = vmatpush1.msra.mxu0 %v1081
  %1166 = vmatprep.subr.mxu0 0.0
  %1167 = vmatpush1.msra.mxu0 %v1082
  %1168 = vmatprep.subr.mxu0 0.0
  %1169 = vmatpush1.msra.mxu0 %v1083
  %1170 = vmatprep.subr.mxu0 0.0
  %1171 = vmatpush1.msra.mxu0 %v1084
  %1172 = vmatprep.subr.mxu0 0.0
  %1173 = vmatpush1.msra.mxu0 %v1085
  %1174 = vmatprep.subr.mxu0 0.0
  %1175 = vmatpush1.msra.mxu0 %v1086
  %1176 = vmatprep.subr.mxu0 0.0
  %1177 = vmatpush1.msra.mxu0 %v1087
  %1178 = vmatprep.subr.mxu0 0.0
  %1179 = vmatpush1.msra.mxu0 %v1088
  %1180 = vmatprep.subr.mxu0 0.0
  %1181 = vmatpush1.msra.mxu0 %v1089
  %1182 = vmatprep.subr.mxu0 0.0
  %1183 = vmatpush1.msra.mxu0 %v1090
  %1184 = vmatprep.subr.mxu0 0.0
  %1185 = vmatpush1.msra.mxu0 %v1091
  %1186 = vmatprep.subr.mxu0 0.0
  %1187 = vmatpush1.msra.mxu0 %v1092
  %1188 = vmatprep.subr.mxu0 0.0
  %1189 = vmatpush1.msra.mxu0 %v1093
  %1190 = vmatprep.mubr.f32.mxu0 %v1059
  %1191 = vmatmul.mubr.f32.gmra.mrb[0].mxu0 %v1058
  %v1192 = vpop.f32.mrb[0].mxu0
  %v1193 = vadd.f32 %v832, %v1192
  %v1194 = vpop.f32.mrb[0].mxu0
  %1195 = vdwg.mxu0
  %1196 = vmatprep.subr.mxu0 0.0
  %1197 = vmatpush1.msra.mxu0 %v1094
  %1198 = vmatprep.subr.mxu0 0.0
  %1199 = vmatpush1.msra.mxu0 %v1095
  %1200 = vmatprep.subr.mxu0 0.0
  %1201 = vmatpush1.msra.mxu0 %v1096
  %1202 = vmatprep.subr.mxu0 0.0
  %1203 = vmatpush1.msra.mxu0 %v1097
  %1204 = vmatprep.subr.mxu0 0.0
  %1205 = vmatpush1.msra.mxu0 %v1098
  %1206 = vmatprep.subr.mxu0 0.0
  %1207 = vmatpush1.msra.mxu0 %v1099
  %1208 = vmatprep.subr.mxu0 0.0
  %1209 = vmatpush1.msra.mxu0 %v1100
  %1210 = vmatprep.subr.mxu0 0.0
  %1211 = vmatpush1.msra.mxu0 %v1101
  %1212 = vmatprep.subr.mxu0 0.0
  %1213 = vmatpush1.msra.mxu0 %v1102
  %1214 = vmatprep.subr.mxu0 0.0
  %1215 = vmatpush1.msra.mxu0 %v1103
  %1216 = vmatprep.subr.mxu0 0.0
  %1217 = vmatpush1.msra.mxu0 %v1104
  %1218 = vmatprep.subr.mxu0 0.0
  %1219 = vmatpush1.msra.mxu0 %v1105
  %1220 = vmatprep.subr.mxu0 0.0
  %1221 = vmatpush1.msra.mxu0 %v1106
  %1222 = vmatprep.subr.mxu0 0.0
  %1223 = vmatpush1.msra.mxu0 %v1107
  %1224 = vmatprep.subr.mxu0 0.0
  %1225 = vmatpush1.msra.mxu0 %v1108
  %1226 = vmatprep.subr.mxu0 0.0
  %1227 = vmatpush1.msra.mxu0 %v1109
  %1228 = vmatprep.subr.mxu0 0.0
  %1229 = vmatpush1.msra.mxu0 %v1110
  %1230 = vmatprep.subr.mxu0 0.0
  %1231 = vmatpush1.msra.mxu0 %v1111
  %1232 = vmatprep.subr.mxu0 0.0
  %1233 = vmatpush1.msra.mxu0 %v1112
  %1234 = vmatprep.subr.mxu0 0.0
  %1235 = vmatpush1.msra.mxu0 %v1113
  %1236 = vmatprep.subr.mxu0 0.0
  %1237 = vmatpush1.msra.mxu0 %v1114
  %1238 = vmatprep.subr.mxu0 0.0
  %1239 = vmatpush1.msra.mxu0 %v1115
  %1240 = vmatprep.subr.mxu0 0.0
  %1241 = vmatpush1.msra.mxu0 %v1116
  %1242 = vmatprep.subr.mxu0 0.0
  %1243 = vmatpush1.msra.mxu0 %v1117
  %1244 = vmatprep.subr.mxu0 0.0
  %1245 = vmatpush1.msra.mxu0 %v1118
  %1246 = vmatprep.subr.mxu0 0.0
  %1247 = vmatpush1.msra.mxu0 %v1119
  %1248 = vmatprep.subr.mxu0 0.0
  %1249 = vmatpush1.msra.mxu0 %v1120
  %1250 = vmatprep.subr.mxu0 0.0
  %1251 = vmatpush1.msra.mxu0 %v1121
  %1252 = vmatprep.subr.mxu0 0.0
  %1253 = vmatpush1.msra.mxu0 %v1122
  %1254 = vmatprep.subr.mxu0 0.0
  %1255 = vmatpush1.msra.mxu0 %v1123
  %1256 = vmatprep.subr.mxu0 0.0
  %1257 = vmatpush1.msra.mxu0 %v1124
  %1258 = vmatprep.subr.mxu0 0.0
  %1259 = vmatpush1.msra.mxu0 %v1125
  %1260 = vmatprep.mubr.f32.mxu0 %v1061
  %1261 = vmatmul.mubr.f32.gmra.mrb[0].mxu0 %v1060
  %v1262 = vpop.f32.mrb[0].mxu0
  %v1263 = vadd.f32 %v1193, %v1262
  %v1264 = vpop.f32.mrb[0].mxu0
  %1265 = vdwg.mxu0
  %v1266 = vtanh.pop %v1263
  %v1267 = vmul.f32 %v830, %v1266
  %v1268 = vld [vmem:[%s8] sm:$0xff]
  %v1269 = vld [vmem:[%s8 + $0x8] sm:$0xff]
  %v1270 = vld [vmem:[%s8 + $0x10] sm:$0xff]
  %v1271 = vld [vmem:[%s8 + $0x18] sm:$0xff]
  %v1272 = vld [vmem:[%s8 + $0x20] sm:$0xff]
  %v1273 = vld [vmem:[%s8 + $0x28] sm:$0xff]
  %v1274 = vld [vmem:[%s8 + $0x30] sm:$0xff]
  %v1275 = vld [vmem:[%s8 + $0x38] sm:$0xff]
  %v1276 = vld [vmem:[%s8 + $0x40] sm:$0xff]
  %v1277 = vld [vmem:[%s8 + $0x48] sm:$0xff]
  %v1278 = vld [vmem:[%s8 + $0x50] sm:$0xff]
  %v1279 = vld [vmem:[%s8 + $0x58] sm:$0xff]
  %v1280 = vld [vmem:[%s8 + $0x60] sm:$0xff]
  %v1281 = vld [vmem:[%s8 + $0x68] sm:$0xff]
  %v1282 = vld [vmem:[%s8 + $0x70] sm:$0xff]
  %v1283 = vld [vmem:[%s8 + $0x78] sm:$0xff]
  %1284 = vmatprep.subr.mxu0 0.0
  %1285 = vmatpush1.msra.mxu0 %v1268
  %1286 = vmatprep.subr.mxu0 0.0
  %1287 = vmatpush1.msra.mxu0 %v1269
  %1288 = vmatprep.subr.mxu0 0.0
  %1289 = vmatpush1.msra.mxu0 %v1270
  %1290 = vmatprep.subr.mxu0 0.0
  %1291 = vmatpush1.msra.mxu0 %v1271
  %1292 = vmatprep.subr.mxu0 0.0
  %1293 = vmatpush1.msra.mxu0 %v1272
  %1294 = vmatprep.subr.mxu0 0.0
  %1295 = vmatpush1.msra.mxu0 %v1273
  %1296 = vmatprep.subr.mxu0 0.0
  %1297 = vmatpush1.msra.mxu0 %v1274
  %1298 = vmatprep.subr.mxu0 0.0
  %1299 = vmatpush1.msra.mxu0 %v1275
  %1300 = vmatprep.subr.mxu0 0.0
  %1301 = vmatpush1.msra.mxu0 %v1276
  %1302 = vmatprep.subr.mxu0 0.0
  %1303 = vmatpush1.msra.mxu0 %v1277
  %1304 = vmatprep.subr.mxu0 0.0
  %1305 = vmatpush1.msra.mxu0 %v1278
  %1306 = vmatprep.subr.mxu0 0.0
  %1307 = vmatpush1.msra.mxu0 %v1279
  %1308 = vmatprep.subr.mxu0 0.0
  %1309 = vmatpush1.msra.mxu0 %v1280
  %1310 = vmatprep.subr.mxu0 0.0
  %1311 = vmatpush1.msra.mxu0 %v1281
  %1312 = vmatprep.subr.mxu0 0.0
  %1313 = vmatpush1.msra.mxu0 %v1282
  %1314 = vmatprep.subr.mxu0 0.0
  %1315 = vmatpush1.msra.mxu0 %v1283
  %1316 = vmatprep.subr.mxu0 0.0
  %1317 = vmatpush1.msra.mxu0 0.0
  %1318 = vmatprep.subr.mxu0 0.0
  %1319 = vmatpush1.msra.mxu0 0.0
  %1320 = vmatprep.subr.mxu0 0.0
  %1321 = vmatpush1.msra.mxu0 0.0
  %1322 = vmatprep.subr.mxu0 0.0
  %1323 = vmatpush1.msra.mxu0 0.0
  %1324 = vmatprep.subr.mxu0 0.0
  %1325 = vmatpush1.msra.mxu0 0.0
  %1326 = vmatprep.subr.mxu0 0.0
  %1327 = vmatpush1.msra.mxu0 0.0
  %1328 = vmatprep.subr.mxu0 0.0
  %1329 = vmatpush1.msra.mxu0 0.0
  %1330 = vmatprep.subr.mxu0 0.0
  %1331 = vmatpush1.msra.mxu0 0.0
  %1332 = vmatprep.subr.mxu0 0.0
  %1333 = vmatpush1.msra.mxu0 0.0
  %1334 = vmatprep.subr.mxu0 0.0
  %1335 = vmatpush1.msra.mxu0 0.0
  %1336 = vmatprep.subr.mxu0 0.0
  %1337 = vmatpush1.msra.mxu0 0.0
  %1338 = vmatprep.subr.mxu0 0.0
  %1339 = vmatpush1.msra.mxu0 0.0
  %1340 = vmatprep.subr.mxu0 0.0
  %1341 = vmatpush1.msra.mxu0 0.0
  %1342 = vmatprep.subr.mxu0 0.0
  %1343 = vmatpush1.msra.mxu0 0.0
  %1344 = vmatprep.subr.mxu0 0.0
  %1345 = vmatpush1.msra.mxu0 0.0
  %1346 = vmatprep.subr.mxu0 0.0
  %1347 = vmatpush1.msra.mxu0 0.0
  %1348 = vmatprep.mubr.f32.mxu0 0.0
  %1349 = vmatmul.mubr.f32.gmra.mrb[0].mxu0 %v1267
  %v1350 = vpop.f32.mrb[0].mxu0
  %v1351 = vadd.f32 %v901, %v1350
  %v1352 = vpop.f32.mrb[0].mxu0
  %1353 = vdwg.mxu0
  %1354 = vst [vmem:[%s9] sm:$0xff] %v1351
  // Predicated region
  $region38: #{_forward_vmap_jit.1} parent=0 // pred_check
    _
  $region39: #{_forward_vmap_jit.1} parent=0 // pred_check_branch
    %1356 = sbr.rel (0) target = $region41
  $region40: #{_forward_vmap_jit.1} parent=0 // pred_region
    _
  $region41: #{_forward_vmap_jit.1} parent=0 // pred_fallthru
    _
  // Predicated region
  $region42: #{_forward_vmap_jit.1} parent=0 // pred_check
    _
  $region43: #{_forward_vmap_jit.1} parent=0 // pred_check_branch
    %1358 = sbr.rel (0) target = $region45
  $region44: #{_forward_vmap_jit.1} parent=0 // pred_region
    _
  $region45: #{_forward_vmap_jit.1} parent=0 // pred_fallthru
    _

</llo_original>
